<compile_context>
chip_gen: v6e
topology: v6e:2x2x1
jax: 0.10.0
libtpu: 0.0.40
codegen_flags: <defaults>
</compile_context>

<pallas_src>
from functools import partial
from typing import Dict, List, NamedTuple, Tuple

import jax
import jax.numpy as jnp
from jax.experimental import pallas as pl
from jax.experimental.pallas import tpu as pltpu


def _round_up(x: int, m: int) -> int:
    return (x + m - 1) // m * m


def _fold_params(d: int) -> Tuple[int, int]:
    """Pad embedding dim d -> dp (power-of-two divisor of 128, or multiple of 128) and
    pick fold so fold*dp (the output lane width) is a multiple of 128."""
    if d >= 128:
        return _round_up(d, 128), 1
    dp = 8
    while dp < d:
        dp *= 2
    return dp, 128 // dp


def _vmem_budget_bytes() -> int:
    try:
        cap = int(pltpu.get_tpu_info().vmem_capacity_bytes)
    except Exception:
        cap = 64 * 1024 * 1024          # assume v7x (most restrictive) if query fails
    return max(cap - (16 << 20), 32 << 20)


# ----------------------------- Pallas kernel -------------------------------

def _gather_kernel(ids_ref, table_ref, out_ref):
    """One-hot-matmul gather producing a lane-dense output tile.

    ids_ref:   (TM4, FOLD)      int32 -- FOLD consecutive flattened ids per output row
    table_ref: (Vp, DP)         f32   -- stacked (zero-padded) table, VMEM-resident
    out_ref:   (TM4, FOLD*DP)   f32   -- FOLD*DP is a multiple of 128 -> lane-dense HBM tile
    """
    ids = ids_ref[...]                                    # (TM4, FOLD)
    tm4, fold = ids.shape
    vpad, dp = table_ref.shape
    table = table_ref[...]
    col = jax.lax.broadcasted_iota(jnp.int32, (tm4, vpad), dimension=1)
    for j in range(fold):                                 # fold static & small -> unrolled
        onehot = (col == ids[:, j:j + 1]).astype(table.dtype)   # one compare, one cast
        out_ref[:, j * dp:(j + 1) * dp] = jnp.dot(
            onehot, table,
            precision=jax.lax.Precision.HIGHEST,          # keep f32 gather exact
            preferred_element_type=jnp.float32,
        ).astype(out_ref.dtype)


def _lookup_impl(table_p: jax.Array, ids_flat: jax.Array, *, dp: int, fold: int,
                 tm: int) -> jax.Array:
    """Gather rows from the padded stacked table for a flat id vector -> (N, dp)."""
    n = int(ids_flat.shape[0])
    unit = fold * 8                                       # one (8,128)-legal id tile
    bucket = max(unit, pl.next_power_of_2(max(n, 1)))     # bucketed -> few kernel shapes
    # Keep >= 2 grid steps when possible so v7x's two TensorCores both get work.
    tm_eff = min(tm, max(unit, bucket // 2))
    grid = bucket // tm_eff
    tm4 = tm_eff // fold
    lanes = fold * dp

    ids_p = jnp.pad(ids_flat.astype(jnp.int32), (0, bucket - n)).reshape(bucket // fold, fold)
    vpad = table_p.shape[0]
    itemsize = jnp.dtype(table_p.dtype).itemsize

    # VMEM budget: resident table (single copy) + double-buffered ids/out tiles +
    # in-kernel one-hot intermediate + headroom; capped by the chip's physical VMEM.
    need = (vpad * dp * itemsize
            + 2 * tm4 * fold * 4
            + 2 * tm4 * lanes * itemsize
            + tm4 * vpad * 4
            + (8 << 20))
    vmem_limit = int(min(max(need, 16 << 20), _vmem_budget_bytes()))

    out = pl.pallas_call(
        _gather_kernel,
        out_shape=jax.ShapeDtypeStruct((bucket // fold, lanes), table_p.dtype),
        grid=(grid,),
        in_specs=[
            pl.BlockSpec((tm4, fold), lambda i: (i, 0)),                   # id tile
            pl.BlockSpec(memory_space=pltpu.MemorySpace.VMEM),             # resident table
        ],
        out_specs=pl.BlockSpec((tm4, lanes), lambda i: (i, 0)),            # lane-dense
        compiler_params=pltpu.CompilerParams(
            dimension_semantics=("parallel",),
            vmem_limit_bytes=vmem_limit,
        ),
    )(ids_p, table_p)

    # Each output row holds `fold` consecutive embeddings -> unfold and trim padding.
    return out.reshape(bucket, dp)[:n]


@partial(jax.jit, static_argnames=("offsets", "dim", "dp", "fold", "tm"))
def _group_lookup(table_p, ids_tuple, *, offsets, dim, dp, fold, tm):
    """Whole per-dim-group path: offset-add + concat + fused lookup + per-feature split."""
    fused = jnp.concatenate(
        [ids.astype(jnp.int32) + off for ids, off in zip(ids_tuple, offsets)])
    emb = _lookup_impl(table_p, fused, dp=dp, fold=fold, tm=tm)      # (N, dp)
    outs, start = [], 0
    for ids in ids_tuple:
        n_f = int(ids.shape[0])
        outs.append(emb[start:start + n_f, :dim])
        start += n_f
    return tuple(outs)


# --------------------- DummyParameterServer (JAX version) ------------------

class EmbeddingConfig(NamedTuple):
    table_name: str
    dim: int
    vocab_size: int
    feature_names: List[str]


class DummyParameterServer:
    """JAX/Pallas re-implementation of the PyTorch DummyParameterServer.

    forward(features) takes a keyed-jagged input {feature: {"values", "lengths"}} and
    returns {feature: {"values": looked-up embeddings, "lengths": jagged lengths}}.
    """

    def __init__(self, embedding_configs: List[EmbeddingConfig], key: jax.Array,
                 *, tm: int = 2048):
        self.configs = embedding_configs
        self._tm = tm
        self.tables: Dict[str, jax.Array] = {}
        self.feature_to_table: Dict[str, str] = {}

        keys = jax.random.split(key, len(embedding_configs))
        for k, cfg in zip(keys, embedding_configs):
            # Deterministic synthetic init (EmbeddingCollection uses fp32).
            # TODO(synk): bf16 tables would halve VMEM/HBM traffic if exactness is waived.
            self.tables[cfg.table_name] = jax.random.normal(
                k, (cfg.vocab_size, cfg.dim), dtype=jnp.float32)
            for fname in cfg.feature_names:
                self.feature_to_table[fname] = cfg.table_name

        # Fuse tables: group by embedding dim, stack along the vocab axis so all of a
        # group's features share a single pallas_call.
        self._feature_meta: Dict[str, tuple] = {}   # fname -> (dim, row offset in stacked vocab)
        self._groups: Dict[int, Dict] = {}          # dim   -> {"table", "dp", "fold"}
        by_dim: Dict[int, List[EmbeddingConfig]] = {}
        for cfg in embedding_configs:
            by_dim.setdefault(cfg.dim, []).append(cfg)

        for d, cfgs in by_dim.items():
            parts, offset = [], 0
            for cfg in cfgs:
                parts.append(self.tables[cfg.table_name])
                for fname in cfg.feature_names:
                    self._feature_meta[fname] = (d, offset)
                offset += cfg.vocab_size
            stacked = jnp.concatenate(parts, axis=0)            # (V_total, d)
            dp, fold = _fold_params(d)
            vpad = _round_up(stacked.shape[0], 128)
            padded = jnp.zeros((vpad, dp), stacked.dtype).at[:stacked.shape[0], :d].set(stacked)
            self._groups[d] = {"table": padded, "dp": dp, "fold": fold}

    def forward(self, features: Dict[str, Dict[str, jax.Array]]) -> Dict[str, Dict[str, jax.Array]]:
        # Bucket features by dim group -> one fused, fully-jitted pallas path per group.
        buckets: Dict[int, list] = {}
        for fname, jt in features.items():
            d, off = self._feature_meta[fname]
            buckets.setdefault(d, []).append((fname, jt, off))

        out: Dict[str, Dict[str, jax.Array]] = {}
        for d, items in buckets.items():
            grp = self._groups[d]
            ids_tuple = tuple(jt["values"] for (_, jt, _) in items)
            offsets = tuple(int(off) for (_, _, off) in items)
            embs = _group_lookup(grp["table"], ids_tuple, offsets=offsets, dim=d,
                                 dp=grp["dp"], fold=grp["fold"], tm=self._tm)
            for (fname, jt, _), e in zip(items, embs):
                out[fname] = {"values": e, "lengths": jt["lengths"]}
        return out

    __call__ = forward


# --------------------------------- main -------------------------------------

if __name__ == "__main__":
    root = jax.random.PRNGKey(0)
    k_params, k_ids_a, k_ids_b, k_big = jax.random.split(root, 4)

    configs = [
        EmbeddingConfig(table_name="table_a", dim=32, vocab_size=64,
                        feature_names=["feat_a"]),
        EmbeddingConfig(table_name="table_b", dim=32, vocab_size=48,
                        feature_names=["feat_b"]),
    ]
    ps = DummyParameterServer(configs, key=k_params)

    # KeyedJaggedTensor-style input (batch = 2): per feature, flattened ids + lengths.
    lengths_a = jnp.array([3, 2], dtype=jnp.int32)   # 5 ids total
    lengths_b = jnp.array([1, 4], dtype=jnp.int32)   # 5 ids total
    ids_a = jax.random.randint(k_ids_a, (int(lengths_a.sum()),), 0, 64, dtype=jnp.int32)
    ids_b = jax.random.randint(k_ids_b, (int(lengths_b.sum()),), 0, 48, dtype=jnp.int32)
    features = {
        "feat_a": {"values": ids_a, "lengths": lengths_a},
        "feat_b": {"values": ids_b, "lengths": lengths_b},
    }

    result = ps(features)
    jax.block_until_ready(jax.tree_util.tree_leaves(result))

    # Correctness check against plain-JAX gather.
    for fname, jt in features.items():
        table = ps.tables[ps.feature_to_table[fname]]
        ref = jnp.take(table, jt["values"], axis=0)
        assert result[fname]["values"].shape == ref.shape
        assert jnp.allclose(result[fname]["values"], ref, atol=1e-6), fname

    # Second check with a larger jagged batch: bucket=2048 -> tm_eff=1024, a 2-step
    # "parallel" grid (both v7x TensorCores busy), 256 KiB output tiles per step.
    lengths_big = jnp.array([700, 341], dtype=jnp.int32)   # 1041 ids
    ids_big = jax.random.randint(k_big, (int(lengths_big.sum()),), 0, 64, dtype=jnp.int32)
    res_big = ps({"feat_a": {"values": ids_big, "lengths": lengths_big}})
    jax.block_until_ready(jax.tree_util.tree_leaves(res_big))
    ref_big = jnp.take(ps.tables["table_a"], ids_big, axis=0)
    assert jnp.allclose(res_big["feat_a"]["values"], ref_big, atol=1e-6)

    print("KERNEL_OK")
</pallas_src>

<mosaic_0001>
module attributes {stable_mosaic.version = 11 : i64} {
  func.func @_gather_kernel(%arg0: i32, %arg1: memref<8x4xi32, #tpu.memory_space<vmem>>, %arg2: memref<128x32xf32, #tpu.memory_space<vmem>>, %arg3: memref<8x128xf32, #tpu.memory_space<vmem>>) attributes {dimension_semantics = [#tpu.dimension_semantics<parallel>], iteration_bounds = array<i64: 1>, scalar_prefetch = 0 : i64, scratch_operands = 0 : i64, tpu.core_type = #tpu.core_type<tc>, window_params = [{transform_indices = @transform_0, window_bounds = array<i64: 8, 4>}, {pipeline_mode = #tpu.pipeline_mode<synchronous>, transform_indices = @transform_1, window_bounds = array<i64: 128, 32>}, {transform_indices = @transform_2, window_bounds = array<i64: 8, 128>}]} {
    %c0 = arith.constant 0 : index
    %c0_0 = arith.constant 0 : index
    %0 = vector.load %arg1[%c0, %c0_0] : memref<8x4xi32, #tpu.memory_space<vmem>>, vector<8x4xi32>
    %c0_1 = arith.constant 0 : index
    %c0_2 = arith.constant 0 : index
    %1 = vector.load %arg2[%c0_1, %c0_2] : memref<128x32xf32, #tpu.memory_space<vmem>>, vector<128x32xf32>
    %2 = tpu.iota {dimensions = array<i32: 1>} : vector<8x128xi32>
    %3 = vector.extract_strided_slice %0 {offsets = [0, 0], sizes = [8, 1], strides = [1, 1]} : vector<8x4xi32> to vector<8x1xi32>
    %4 = vector.broadcast %3 : vector<8x1xi32> to vector<8x128xi32>
    %5 = arith.cmpi eq, %2, %4 : vector<8x128xi32>
    %6 = arith.extui %5 : vector<8x128xi1> to vector<8x128xi32>
    %7 = arith.sitofp %6 : vector<8x128xi32> to vector<8x128xf32>
    %cst = arith.constant dense<0.000000e+00> : vector<8x32xf32>
    %8 = tpu.matmul %7, %1, %cst {dimension_numbers = #tpu.dot_dimension_numbers<[1], [0], [0], [1], [0, 0, 1, 1], [], []>, precision = #tpu.contract_precision<fp32>} : vector<8x128xf32>, vector<128x32xf32>, vector<8x32xf32> -> vector<8x32xf32>
    %c0_3 = arith.constant 0 : index
    %c0_4 = arith.constant 0 : index
    %9 = vector.load %arg3[%c0_3, %c0_4] : memref<8x128xf32, #tpu.memory_space<vmem>>, vector<8x32xf32>
    tpu.vector_store %arg3[%c0_3, %c0_4], %8 {strides = array<i32>} : memref<8x128xf32, #tpu.memory_space<vmem>>, vector<8x32xf32>,
    %10 = vector.extract_strided_slice %0 {offsets = [0, 1], sizes = [8, 1], strides = [1, 1]} : vector<8x4xi32> to vector<8x1xi32>
    %11 = vector.broadcast %10 : vector<8x1xi32> to vector<8x128xi32>
    %12 = arith.cmpi eq, %2, %11 : vector<8x128xi32>
    %13 = arith.extui %12 : vector<8x128xi1> to vector<8x128xi32>
    %14 = arith.sitofp %13 : vector<8x128xi32> to vector<8x128xf32>
    %cst_5 = arith.constant dense<0.000000e+00> : vector<8x32xf32>
    %15 = tpu.matmul %14, %1, %cst_5 {dimension_numbers = #tpu.dot_dimension_numbers<[1], [0], [0], [1], [0, 0, 1, 1], [], []>, precision = #tpu.contract_precision<fp32>} : vector<8x128xf32>, vector<128x32xf32>, vector<8x32xf32> -> vector<8x32xf32>
    %c0_6 = arith.constant 0 : index
    %c32 = arith.constant 32 : index
    %16 = vector.load %arg3[%c0_6, %c32] : memref<8x128xf32, #tpu.memory_space<vmem>>, vector<8x32xf32>
    tpu.vector_store %arg3[%c0_6, %c32], %15 {strides = array<i32>} : memref<8x128xf32, #tpu.memory_space<vmem>>, vector<8x32xf32>,
    %17 = vector.extract_strided_slice %0 {offsets = [0, 2], sizes = [8, 1], strides = [1, 1]} : vector<8x4xi32> to vector<8x1xi32>
    %18 = vector.broadcast %17 : vector<8x1xi32> to vector<8x128xi32>
    %19 = arith.cmpi eq, %2, %18 : vector<8x128xi32>
    %20 = arith.extui %19 : vector<8x128xi1> to vector<8x128xi32>
    %21 = arith.sitofp %20 : vector<8x128xi32> to vector<8x128xf32>
    %cst_7 = arith.constant dense<0.000000e+00> : vector<8x32xf32>
    %22 = tpu.matmul %21, %1, %cst_7 {dimension_numbers = #tpu.dot_dimension_numbers<[1], [0], [0], [1], [0, 0, 1, 1], [], []>, precision = #tpu.contract_precision<fp32>} : vector<8x128xf32>, vector<128x32xf32>, vector<8x32xf32> -> vector<8x32xf32>
    %c0_8 = arith.constant 0 : index
    %c64 = arith.constant 64 : index
    %23 = vector.load %arg3[%c0_8, %c64] : memref<8x128xf32, #tpu.memory_space<vmem>>, vector<8x32xf32>
    tpu.vector_store %arg3[%c0_8, %c64], %22 {strides = array<i32>} : memref<8x128xf32, #tpu.memory_space<vmem>>, vector<8x32xf32>,
    %24 = vector.extract_strided_slice %0 {offsets = [0, 3], sizes = [8, 1], strides = [1, 1]} : vector<8x4xi32> to vector<8x1xi32>
    %25 = vector.broadcast %24 : vector<8x1xi32> to vector<8x128xi32>
    %26 = arith.cmpi eq, %2, %25 : vector<8x128xi32>
    %27 = arith.extui %26 : vector<8x128xi1> to vector<8x128xi32>
    %28 = arith.sitofp %27 : vector<8x128xi32> to vector<8x128xf32>
    %cst_9 = arith.constant dense<0.000000e+00> : vector<8x32xf32>
    %29 = tpu.matmul %28, %1, %cst_9 {dimension_numbers = #tpu.dot_dimension_numbers<[1], [0], [0], [1], [0, 0, 1, 1], [], []>, precision = #tpu.contract_precision<fp32>} : vector<8x128xf32>, vector<128x32xf32>, vector<8x32xf32> -> vector<8x32xf32>
    %c0_10 = arith.constant 0 : index
    %c96 = arith.constant 96 : index
    %30 = vector.load %arg3[%c0_10, %c96] : memref<8x128xf32, #tpu.memory_space<vmem>>, vector<8x32xf32>
    tpu.vector_store %arg3[%c0_10, %c96], %29 {strides = array<i32>} : memref<8x128xf32, #tpu.memory_space<vmem>>, vector<8x32xf32>,
    return
  }
  func.func @transform_0(%arg0: i32) -> (i32, i32) {
    %c0_i32 = arith.constant 0 : i32
    %c0_i32_0 = arith.constant 0 : i32
    return %arg0, %c0_i32 : i32, i32
  }
  func.func @transform_1(%arg0: i32) -> (i32, i32) {
    %c0_i32 = arith.constant 0 : i32
    %c0_i32_0 = arith.constant 0 : i32
    %c0_i32_1 = arith.constant 0 : i32
    return %c0_i32, %c0_i32_0 : i32, i32
  }
  func.func @transform_2(%arg0: i32) -> (i32, i32) {
    %c0_i32 = arith.constant 0 : i32
    %c0_i32_0 = arith.constant 0 : i32
    return %arg0, %c0_i32 : i32, i32
  }
}

</mosaic_0001>

<llo_original>
// kernel: _group_lookup.1
$region0: #{_group_lookup.1}
  #allocation0 [shape = 'u32[]', space=smem, size = 0x4, offset = 0x4, fixed_abs, tag = 'smem constant byte address 0x4 - core index']
  #allocation1 [shape = 'u32[144,128]{1,0:T(1,128)}', space=vmem, size = 0x12000, scoped, tag = 'internal scratch']
  %s0 = inlined_call_operand.vmem [shape: s32[8,4], index: 0, kind: input, shape index: {}]
  %s1 = inlined_call_operand.vmem [shape: f32[128,32], index: 1, kind: input, shape index: {}]
  %s2 = inlined_call_operand.vmem [shape: f32[8,128], index: 2, kind: output, shape index: {}]
  %s3 = sld [smem:[#allocation0]]
  $region18: #{_group_lookup.1} parent=0
    _
  %s5 = ssub.s32 1, %s3
  %s6 = scalar_select 0, %s5, %s3
  // Predicated region
  $region2: #{_group_lookup.1} parent=0 // pred_check
    _
  $region3: #{_group_lookup.1} parent=0 // pred_check_branch
    %8 = sbr.rel (0) target = $region5
  $region4: #{_group_lookup.1} parent=0 // pred_region
    _
  $region5: #{_group_lookup.1} parent=0 // pred_fallthru
    _
  // Predicated region
  $region6: #{_group_lookup.1} parent=0 // pred_check
    _
  $region7: #{_group_lookup.1} parent=0 // pred_check_branch
    %10 = sbr.rel (0) target = $region9
  $region8: #{_group_lookup.1} parent=0 // pred_region
    _
  $region9: #{_group_lookup.1} parent=0 // pred_fallthru
    _
  %v11 = vld [vmem:[%s0] sm:$0xff]
  %v12 = vld [vmem:[%s1] sm:$0xff]
  %v13 = vld [vmem:[%s1 + $0x8] sm:$0xff]
  %v14 = vld [vmem:[%s1 + $0x10] sm:$0xff]
  %v15 = vld [vmem:[%s1 + $0x18] sm:$0xff]
  %v16 = vld [vmem:[%s1 + $0x20] sm:$0xff]
  %v17 = vld [vmem:[%s1 + $0x28] sm:$0xff]
  %v18 = vld [vmem:[%s1 + $0x30] sm:$0xff]
  %v19 = vld [vmem:[%s1 + $0x38] sm:$0xff]
  %v20 = vld [vmem:[%s1 + $0x40] sm:$0xff]
  %v21 = vld [vmem:[%s1 + $0x48] sm:$0xff]
  %v22 = vld [vmem:[%s1 + $0x50] sm:$0xff]
  %v23 = vld [vmem:[%s1 + $0x58] sm:$0xff]
  %v24 = vld [vmem:[%s1 + $0x60] sm:$0xff]
  %v25 = vld [vmem:[%s1 + $0x68] sm:$0xff]
  %v26 = vld [vmem:[%s1 + $0x70] sm:$0xff]
  %v27 = vld [vmem:[%s1 + $0x78] sm:$0xff]
  %v28 = vlaneseq
  %v29 = vand.u32 %v28, 127
  %30 = vset.pattern.permute.xlu0 0
  %31 = vperm.xlu0 %30, %v11
  %v32 = vpop.permute.xlu0 %31
  %vm33 = vcmp.eq.s32.totalorder %v29, %v32
  %v34 = vsel %vm33, 1, 0
  %v35 = vcvt.s32.f32 %v34
  %36 = vmatprep.subr.mxu0 0.0
  %v37 = vand.u32 %v27, 4294901760
  %38 = vmatpush1.msra.mxu0 %v37
  %39 = vmatprep.subr.mxu0 0.0
  %v40 = vand.u32 %v26, 4294901760
  %41 = vmatpush1.msra.mxu0 %v40
  %42 = vmatprep.subr.mxu0 0.0
  %v43 = vand.u32 %v25, 4294901760
  %44 = vmatpush1.msra.mxu0 %v43
  %45 = vmatprep.subr.mxu0 0.0
  %v46 = vand.u32 %v24, 4294901760
  %47 = vmatpush1.msra.mxu0 %v46
  %48 = vmatprep.subr.mxu0 0.0
  %v49 = vand.u32 %v23, 4294901760
  %50 = vmatpush1.msra.mxu0 %v49
  %51 = vmatprep.subr.mxu0 0.0
  %v52 = vand.u32 %v22, 4294901760
  %53 = vmatpush1.msra.mxu0 %v52
  %54 = vmatprep.subr.mxu0 0.0
  %v55 = vand.u32 %v21, 4294901760
  %56 = vmatpush1.msra.mxu0 %v55
  %57 = vmatprep.subr.mxu0 0.0
  %v58 = vand.u32 %v20, 4294901760
  %59 = vmatpush1.msra.mxu0 %v58
  %60 = vmatprep.subr.mxu0 0.0
  %v61 = vand.u32 %v19, 4294901760
  %62 = vmatpush1.msra.mxu0 %v61
  %63 = vmatprep.subr.mxu0 0.0
  %v64 = vand.u32 %v18, 4294901760
  %65 = vmatpush1.msra.mxu0 %v64
  %66 = vmatprep.subr.mxu0 0.0
  %v67 = vand.u32 %v17, 4294901760
  %68 = vmatpush1.msra.mxu0 %v67
  %69 = vmatprep.subr.mxu0 0.0
  %v70 = vand.u32 %v16, 4294901760
  %71 = vmatpush1.msra.mxu0 %v70
  %72 = vmatprep.subr.mxu0 0.0
  %v73 = vand.u32 %v15, 4294901760
  %74 = vmatpush1.msra.mxu0 %v73
  %75 = vmatprep.subr.mxu0 0.0
  %v76 = vand.u32 %v14, 4294901760
  %77 = vmatpush1.msra.mxu0 %v76
  %78 = vmatprep.subr.mxu0 0.0
  %v79 = vand.u32 %v13, 4294901760
  %80 = vmatpush1.msra.mxu0 %v79
  %81 = vmatprep.subr.mxu0 0.0
  %v82 = vand.u32 %v12, 4294901760
  %83 = vmatpush1.msra.mxu0 %v82
  %84 = vmatprep.subr.mxu0 0.0
  %85 = vmatpush2.msra.mxu0 0.0
  %86 = vmatprep.subr.mxu0 0.0
  %87 = vmatpush2.msra.mxu0 0.0
  %88 = vmatprep.subr.mxu0 0.0
  %89 = vmatpush2.msra.mxu0 0.0
  %90 = vmatprep.subr.mxu0 0.0
  %91 = vmatpush2.msra.mxu0 0.0
  %92 = vmatprep.subr.mxu0 0.0
  %93 = vmatpush2.msra.mxu0 0.0
  %94 = vmatprep.subr.mxu0 0.0
  %95 = vmatpush2.msra.mxu0 0.0
  %96 = vmatprep.subr.mxu0 0.0
  %97 = vmatpush2.msra.mxu0 0.0
  %98 = vmatprep.subr.mxu0 0.0
  %99 = vmatpush2.msra.mxu0 0.0
  %100 = vmatprep.subr.mxu0 0.0
  %101 = vmatpush2.msra.mxu0 0.0
  %102 = vmatprep.subr.mxu0 0.0
  %103 = vmatpush2.msra.mxu0 0.0
  %104 = vmatprep.subr.mxu0 0.0
  %105 = vmatpush2.msra.mxu0 0.0
  %106 = vmatprep.subr.mxu0 0.0
  %107 = vmatpush2.msra.mxu0 0.0
  %108 = vmatprep.subr.mxu0 0.0
  %109 = vmatpush2.msra.mxu0 0.0
  %110 = vmatprep.subr.mxu0 0.0
  %111 = vmatpush2.msra.mxu0 0.0
  %112 = vmatprep.subr.mxu0 0.0
  %113 = vmatpush2.msra.mxu0 0.0
  %114 = vmatprep.subr.mxu0 0.0
  %115 = vmatpush2.msra.mxu0 0.0
  %116 = vmatprep.mubr.f32.mxu0 0.0
  %v117 = vand.u32 %v35, 4294901760
  %v118 = vsub.f32 %v35, %v117
  %v119 = vand.u32 %v118, 4294901760
  %v120 = vsub.f32 %v118, %v119
  %v121 = vand.u32 %v120, 4294901760
  %122 = vmatmul.mubr.f32.gmra.mxu0 %v121
  %v123 = vpop.f32.mrf.mxu0
  %v124 = vadd.f32 0.0, %v123
  %v125 = vpop.f32.mrf.mxu0
  %126 = vdwg.mxu0
  %127 = vmatprep.subr.mxu0 0.0
  %v128 = vand.u32 %v27, 4294901760
  %v129 = vsub.f32 %v27, %v128
  %v130 = vand.u32 %v129, 4294901760
  %v131 = vsub.f32 %v129, %v130
  %v132 = vand.u32 %v131, 4294901760
  %133 = vmatpush1.msra.mxu0 %v132
  %134 = vmatprep.subr.mxu0 0.0
  %v135 = vand.u32 %v26, 4294901760
  %v136 = vsub.f32 %v26, %v135
  %v137 = vand.u32 %v136, 4294901760
  %v138 = vsub.f32 %v136, %v137
  %v139 = vand.u32 %v138, 4294901760
  %140 = vmatpush1.msra.mxu0 %v139
  %141 = vmatprep.subr.mxu0 0.0
  %v142 = vand.u32 %v25, 4294901760
  %v143 = vsub.f32 %v25, %v142
  %v144 = vand.u32 %v143, 4294901760
  %v145 = vsub.f32 %v143, %v144
  %v146 = vand.u32 %v145, 4294901760
  %147 = vmatpush1.msra.mxu0 %v146
  %148 = vmatprep.subr.mxu0 0.0
  %v149 = vand.u32 %v24, 4294901760
  %v150 = vsub.f32 %v24, %v149
  %v151 = vand.u32 %v150, 4294901760
  %v152 = vsub.f32 %v150, %v151
  %v153 = vand.u32 %v152, 4294901760
  %154 = vmatpush1.msra.mxu0 %v153
  %155 = vmatprep.subr.mxu0 0.0
  %v156 = vand.u32 %v23, 4294901760
  %v157 = vsub.f32 %v23, %v156
  %v158 = vand.u32 %v157, 4294901760
  %v159 = vsub.f32 %v157, %v158
  %v160 = vand.u32 %v159, 4294901760
  %161 = vmatpush1.msra.mxu0 %v160
  %162 = vmatprep.subr.mxu0 0.0
  %v163 = vand.u32 %v22, 4294901760
  %v164 = vsub.f32 %v22, %v163
  %v165 = vand.u32 %v164, 4294901760
  %v166 = vsub.f32 %v164, %v165
  %v167 = vand.u32 %v166, 4294901760
  %168 = vmatpush1.msra.mxu0 %v167
  %169 = vmatprep.subr.mxu0 0.0
  %v170 = vand.u32 %v21, 4294901760
  %v171 = vsub.f32 %v21, %v170
  %v172 = vand.u32 %v171, 4294901760
  %v173 = vsub.f32 %v171, %v172
  %v174 = vand.u32 %v173, 4294901760
  %175 = vmatpush1.msra.mxu0 %v174
  %176 = vmatprep.subr.mxu0 0.0
  %v177 = vand.u32 %v20, 4294901760
  %v178 = vsub.f32 %v20, %v177
  %v179 = vand.u32 %v178, 4294901760
  %v180 = vsub.f32 %v178, %v179
  %v181 = vand.u32 %v180, 4294901760
  %182 = vmatpush1.msra.mxu0 %v181
  %183 = vmatprep.subr.mxu0 0.0
  %v184 = vand.u32 %v19, 4294901760
  %v185 = vsub.f32 %v19, %v184
  %v186 = vand.u32 %v185, 4294901760
  %v187 = vsub.f32 %v185, %v186
  %v188 = vand.u32 %v187, 4294901760
  %189 = vmatpush1.msra.mxu0 %v188
  %190 = vmatprep.subr.mxu0 0.0
  %v191 = vand.u32 %v18, 4294901760
  %v192 = vsub.f32 %v18, %v191
  %v193 = vand.u32 %v192, 4294901760
  %v194 = vsub.f32 %v192, %v193
  %v195 = vand.u32 %v194, 4294901760
  %196 = vmatpush1.msra.mxu0 %v195
  %197 = vmatprep.subr.mxu0 0.0
  %v198 = vand.u32 %v17, 4294901760
  %v199 = vsub.f32 %v17, %v198
  %v200 = vand.u32 %v199, 4294901760
  %v201 = vsub.f32 %v199, %v200
  %v202 = vand.u32 %v201, 4294901760
  %203 = vmatpush1.msra.mxu0 %v202
  %204 = vmatprep.subr.mxu0 0.0
  %v205 = vand.u32 %v16, 4294901760
  %v206 = vsub.f32 %v16, %v205
  %v207 = vand.u32 %v206, 4294901760
  %v208 = vsub.f32 %v206, %v207
  %v209 = vand.u32 %v208, 4294901760
  %210 = vmatpush1.msra.mxu0 %v209
  %211 = vmatprep.subr.mxu0 0.0
  %v212 = vand.u32 %v15, 4294901760
  %v213 = vsub.f32 %v15, %v212
  %v214 = vand.u32 %v213, 4294901760
  %v215 = vsub.f32 %v213, %v214
  %v216 = vand.u32 %v215, 4294901760
  %217 = vmatpush1.msra.mxu0 %v216
  %218 = vmatprep.subr.mxu0 0.0
  %v219 = vand.u32 %v14, 4294901760
  %v220 = vsub.f32 %v14, %v219
  %v221 = vand.u32 %v220, 4294901760
  %v222 = vsub.f32 %v220, %v221
  %v223 = vand.u32 %v222, 4294901760
  %224 = vmatpush1.msra.mxu0 %v223
  %225 = vmatprep.subr.mxu0 0.0
  %v226 = vand.u32 %v13, 4294901760
  %v227 = vsub.f32 %v13, %v226
  %v228 = vand.u32 %v227, 4294901760
  %v229 = vsub.f32 %v227, %v228
  %v230 = vand.u32 %v229, 4294901760
  %231 = vmatpush1.msra.mxu0 %v230
  %232 = vmatprep.subr.mxu0 0.0
  %v233 = vand.u32 %v12, 4294901760
  %v234 = vsub.f32 %v12, %v233
  %v235 = vand.u32 %v234, 4294901760
  %v236 = vsub.f32 %v234, %v235
  %v237 = vand.u32 %v236, 4294901760
  %238 = vmatpush1.msra.mxu0 %v237
  %239 = vmatprep.subr.mxu0 0.0
  %240 = vmatpush2.msra.mxu0 0.0
  %241 = vmatprep.subr.mxu0 0.0
  %242 = vmatpush2.msra.mxu0 0.0
  %243 = vmatprep.subr.mxu0 0.0
  %244 = vmatpush2.msra.mxu0 0.0
  %245 = vmatprep.subr.mxu0 0.0
  %246 = vmatpush2.msra.mxu0 0.0
  %247 = vmatprep.subr.mxu0 0.0
  %248 = vmatpush2.msra.mxu0 0.0
  %249 = vmatprep.subr.mxu0 0.0
  %250 = vmatpush2.msra.mxu0 0.0
  %251 = vmatprep.subr.mxu0 0.0
  %252 = vmatpush2.msra.mxu0 0.0
  %253 = vmatprep.subr.mxu0 0.0
  %254 = vmatpush2.msra.mxu0 0.0
  %255 = vmatprep.subr.mxu0 0.0
  %256 = vmatpush2.msra.mxu0 0.0
  %257 = vmatprep.subr.mxu0 0.0
  %258 = vmatpush2.msra.mxu0 0.0
  %259 = vmatprep.subr.mxu0 0.0
  %260 = vmatpush2.msra.mxu0 0.0
  %261 = vmatprep.subr.mxu0 0.0
  %262 = vmatpush2.msra.mxu0 0.0
  %263 = vmatprep.subr.mxu0 0.0
  %264 = vmatpush2.msra.mxu0 0.0
  %265 = vmatprep.subr.mxu0 0.0
  %266 = vmatpush2.msra.mxu0 0.0
  %267 = vmatprep.subr.mxu0 0.0
  %268 = vmatpush2.msra.mxu0 0.0
  %269 = vmatprep.subr.mxu0 0.0
  %270 = vmatpush2.msra.mxu0 0.0
  %271 = vmatprep.mubr.f32.mxu0 0.0
  %v272 = vand.u32 %v35, 4294901760
  %273 = vmatmul.mubr.f32.gmra.mxu0 %v272
  %v274 = vpop.f32.mrf.mxu0
  %v275 = vadd.f32 %v124, %v274
  %v276 = vpop.f32.mrf.mxu0
  %277 = vdwg.mxu0
  %278 = vmatprep.subr.mxu0 0.0
  %v279 = vand.u32 %v27, 4294901760
  %v280 = vsub.f32 %v27, %v279
  %281 = vmatpush1.msra.mxu0 %v280
  %282 = vmatprep.subr.mxu0 0.0
  %v283 = vand.u32 %v26, 4294901760
  %v284 = vsub.f32 %v26, %v283
  %285 = vmatpush1.msra.mxu0 %v284
  %286 = vmatprep.subr.mxu0 0.0
  %v287 = vand.u32 %v25, 4294901760
  %v288 = vsub.f32 %v25, %v287
  %289 = vmatpush1.msra.mxu0 %v288
  %290 = vmatprep.subr.mxu0 0.0
  %v291 = vand.u32 %v24, 4294901760
  %v292 = vsub.f32 %v24, %v291
  %293 = vmatpush1.msra.mxu0 %v292
  %294 = vmatprep.subr.mxu0 0.0
  %v295 = vand.u32 %v23, 4294901760
  %v296 = vsub.f32 %v23, %v295
  %297 = vmatpush1.msra.mxu0 %v296
  %298 = vmatprep.subr.mxu0 0.0
  %v299 = vand.u32 %v22, 4294901760
  %v300 = vsub.f32 %v22, %v299
  %301 = vmatpush1.msra.mxu0 %v300
  %302 = vmatprep.subr.mxu0 0.0
  %v303 = vand.u32 %v21, 4294901760
  %v304 = vsub.f32 %v21, %v303
  %305 = vmatpush1.msra.mxu0 %v304
  %306 = vmatprep.subr.mxu0 0.0
  %v307 = vand.u32 %v20, 4294901760
  %v308 = vsub.f32 %v20, %v307
  %309 = vmatpush1.msra.mxu0 %v308
  %310 = vmatprep.subr.mxu0 0.0
  %v311 = vand.u32 %v19, 4294901760
  %v312 = vsub.f32 %v19, %v311
  %313 = vmatpush1.msra.mxu0 %v312
  %314 = vmatprep.subr.mxu0 0.0
  %v315 = vand.u32 %v18, 4294901760
  %v316 = vsub.f32 %v18, %v315
  %317 = vmatpush1.msra.mxu0 %v316
  %318 = vmatprep.subr.mxu0 0.0
  %v319 = vand.u32 %v17, 4294901760
  %v320 = vsub.f32 %v17, %v319
  %321 = vmatpush1.msra.mxu0 %v320
  %322 = vmatprep.subr.mxu0 0.0
  %v323 = vand.u32 %v16, 4294901760
  %v324 = vsub.f32 %v16, %v323
  %325 = vmatpush1.msra.mxu0 %v324
  %326 = vmatprep.subr.mxu0 0.0
  %v327 = vand.u32 %v15, 4294901760
  %v328 = vsub.f32 %v15, %v327
  %329 = vmatpush1.msra.mxu0 %v328
  %330 = vmatprep.subr.mxu0 0.0
  %v331 = vand.u32 %v14, 4294901760
  %v332 = vsub.f32 %v14, %v331
  %333 = vmatpush1.msra.mxu0 %v332
  %334 = vmatprep.subr.mxu0 0.0
  %v335 = vand.u32 %v13, 4294901760
  %v336 = vsub.f32 %v13, %v335
  %337 = vmatpush1.msra.mxu0 %v336
  %338 = vmatprep.subr.mxu0 0.0
  %v339 = vand.u32 %v12, 4294901760
  %v340 = vsub.f32 %v12, %v339
  %341 = vmatpush1.msra.mxu0 %v340
  %342 = vmatprep.subr.mxu0 0.0
  %343 = vmatpush2.msra.mxu0 0.0
  %344 = vmatprep.subr.mxu0 0.0
  %345 = vmatpush2.msra.mxu0 0.0
  %346 = vmatprep.subr.mxu0 0.0
  %347 = vmatpush2.msra.mxu0 0.0
  %348 = vmatprep.subr.mxu0 0.0
  %349 = vmatpush2.msra.mxu0 0.0
  %350 = vmatprep.subr.mxu0 0.0
  %351 = vmatpush2.msra.mxu0 0.0
  %352 = vmatprep.subr.mxu0 0.0
  %353 = vmatpush2.msra.mxu0 0.0
  %354 = vmatprep.subr.mxu0 0.0
  %355 = vmatpush2.msra.mxu0 0.0
  %356 = vmatprep.subr.mxu0 0.0
  %357 = vmatpush2.msra.mxu0 0.0
  %358 = vmatprep.subr.mxu0 0.0
  %359 = vmatpush2.msra.mxu0 0.0
  %360 = vmatprep.subr.mxu0 0.0
  %361 = vmatpush2.msra.mxu0 0.0
  %362 = vmatprep.subr.mxu0 0.0
  %363 = vmatpush2.msra.mxu0 0.0
  %364 = vmatprep.subr.mxu0 0.0
  %365 = vmatpush2.msra.mxu0 0.0
  %366 = vmatprep.subr.mxu0 0.0
  %367 = vmatpush2.msra.mxu0 0.0
  %368 = vmatprep.subr.mxu0 0.0
  %369 = vmatpush2.msra.mxu0 0.0
  %370 = vmatprep.subr.mxu0 0.0
  %371 = vmatpush2.msra.mxu0 0.0
  %372 = vmatprep.subr.mxu0 0.0
  %373 = vmatpush2.msra.mxu0 0.0
  %374 = vmatprep.mubr.f32.mxu0 0.0
  %v375 = vand.u32 %v35, 4294901760
  %v376 = vsub.f32 %v35, %v375
  %377 = vmatmul.mubr.f32.gmra.mxu0 %v376
  %v378 = vpop.f32.mrf.mxu0
  %v379 = vadd.f32 %v275, %v378
  %v380 = vpop.f32.mrf.mxu0
  %381 = vdwg.mxu0
  %382 = vmatprep.subr.mxu0 0.0
  %v383 = vand.u32 %v27, 4294901760
  %384 = vmatpush1.msra.mxu0 %v383
  %385 = vmatprep.subr.mxu0 0.0
  %v386 = vand.u32 %v26, 4294901760
  %387 = vmatpush1.msra.mxu0 %v386
  %388 = vmatprep.subr.mxu0 0.0
  %v389 = vand.u32 %v25, 4294901760
  %390 = vmatpush1.msra.mxu0 %v389
  %391 = vmatprep.subr.mxu0 0.0
  %v392 = vand.u32 %v24, 4294901760
  %393 = vmatpush1.msra.mxu0 %v392
  %394 = vmatprep.subr.mxu0 0.0
  %v395 = vand.u32 %v23, 4294901760
  %396 = vmatpush1.msra.mxu0 %v395
  %397 = vmatprep.subr.mxu0 0.0
  %v398 = vand.u32 %v22, 4294901760
  %399 = vmatpush1.msra.mxu0 %v398
  %400 = vmatprep.subr.mxu0 0.0
  %v401 = vand.u32 %v21, 4294901760
  %402 = vmatpush1.msra.mxu0 %v401
  %403 = vmatprep.subr.mxu0 0.0
  %v404 = vand.u32 %v20, 4294901760
  %405 = vmatpush1.msra.mxu0 %v404
  %406 = vmatprep.subr.mxu0 0.0
  %v407 = vand.u32 %v19, 4294901760
  %408 = vmatpush1.msra.mxu0 %v407
  %409 = vmatprep.subr.mxu0 0.0
  %v410 = vand.u32 %v18, 4294901760
  %411 = vmatpush1.msra.mxu0 %v410
  %412 = vmatprep.subr.mxu0 0.0
  %v413 = vand.u32 %v17, 4294901760
  %414 = vmatpush1.msra.mxu0 %v413
  %415 = vmatprep.subr.mxu0 0.0
  %v416 = vand.u32 %v16, 4294901760
  %417 = vmatpush1.msra.mxu0 %v416
  %418 = vmatprep.subr.mxu0 0.0
  %v419 = vand.u32 %v15, 4294901760
  %420 = vmatpush1.msra.mxu0 %v419
  %421 = vmatprep.subr.mxu0 0.0
  %v422 = vand.u32 %v14, 4294901760
  %423 = vmatpush1.msra.mxu0 %v422
  %424 = vmatprep.subr.mxu0 0.0
  %v425 = vand.u32 %v13, 4294901760
  %426 = vmatpush1.msra.mxu0 %v425
  %427 = vmatprep.subr.mxu0 0.0
  %v428 = vand.u32 %v12, 4294901760
  %429 = vmatpush1.msra.mxu0 %v428
  %430 = vmatprep.subr.mxu0 0.0
  %431 = vmatpush2.msra.mxu0 0.0
  %432 = vmatprep.subr.mxu0 0.0
  %433 = vmatpush2.msra.mxu0 0.0
  %434 = vmatprep.subr.mxu0 0.0
  %435 = vmatpush2.msra.mxu0 0.0
  %436 = vmatprep.subr.mxu0 0.0
  %437 = vmatpush2.msra.mxu0 0.0
  %438 = vmatprep.subr.mxu0 0.0
  %439 = vmatpush2.msra.mxu0 0.0
  %440 = vmatprep.subr.mxu0 0.0
  %441 = vmatpush2.msra.mxu0 0.0
  %442 = vmatprep.subr.mxu0 0.0
  %443 = vmatpush2.msra.mxu0 0.0
  %444 = vmatprep.subr.mxu0 0.0
  %445 = vmatpush2.msra.mxu0 0.0
  %446 = vmatprep.subr.mxu0 0.0
  %447 = vmatpush2.msra.mxu0 0.0
  %448 = vmatprep.subr.mxu0 0.0
  %449 = vmatpush2.msra.mxu0 0.0
  %450 = vmatprep.subr.mxu0 0.0
  %451 = vmatpush2.msra.mxu0 0.0
  %452 = vmatprep.subr.mxu0 0.0
  %453 = vmatpush2.msra.mxu0 0.0
  %454 = vmatprep.subr.mxu0 0.0
  %455 = vmatpush2.msra.mxu0 0.0
  %456 = vmatprep.subr.mxu0 0.0
  %457 = vmatpush2.msra.mxu0 0.0
  %458 = vmatprep.subr.mxu0 0.0
  %459 = vmatpush2.msra.mxu0 0.0
  %460 = vmatprep.subr.mxu0 0.0
  %461 = vmatpush2.msra.mxu0 0.0
  %462 = vmatprep.mubr.f32.mxu0 0.0
  %v463 = vand.u32 %v35, 4294901760
  %v464 = vsub.f32 %v35, %v463
  %v465 = vand.u32 %v464, 4294901760
  %466 = vmatmul.mubr.f32.gmra.mxu0 %v465
  %v467 = vpop.f32.mrf.mxu0
  %v468 = vadd.f32 %v379, %v467
  %v469 = vpop.f32.mrf.mxu0
  %470 = vdwg.mxu0
  %471 = vmatprep.subr.mxu0 0.0
  %v472 = vand.u32 %v27, 4294901760
  %v473 = vsub.f32 %v27, %v472
  %v474 = vand.u32 %v473, 4294901760
  %475 = vmatpush1.msra.mxu0 %v474
  %476 = vmatprep.subr.mxu0 0.0
  %v477 = vand.u32 %v26, 4294901760
  %v478 = vsub.f32 %v26, %v477
  %v479 = vand.u32 %v478, 4294901760
  %480 = vmatpush1.msra.mxu0 %v479
  %481 = vmatprep.subr.mxu0 0.0
  %v482 = vand.u32 %v25, 4294901760
  %v483 = vsub.f32 %v25, %v482
  %v484 = vand.u32 %v483, 4294901760
  %485 = vmatpush1.msra.mxu0 %v484
  %486 = vmatprep.subr.mxu0 0.0
  %v487 = vand.u32 %v24, 4294901760
  %v488 = vsub.f32 %v24, %v487
  %v489 = vand.u32 %v488, 4294901760
  %490 = vmatpush1.msra.mxu0 %v489
  %491 = vmatprep.subr.mxu0 0.0
  %v492 = vand.u32 %v23, 4294901760
  %v493 = vsub.f32 %v23, %v492
  %v494 = vand.u32 %v493, 4294901760
  %495 = vmatpush1.msra.mxu0 %v494
  %496 = vmatprep.subr.mxu0 0.0
  %v497 = vand.u32 %v22, 4294901760
  %v498 = vsub.f32 %v22, %v497
  %v499 = vand.u32 %v498, 4294901760
  %500 = vmatpush1.msra.mxu0 %v499
  %501 = vmatprep.subr.mxu0 0.0
  %v502 = vand.u32 %v21, 4294901760
  %v503 = vsub.f32 %v21, %v502
  %v504 = vand.u32 %v503, 4294901760
  %505 = vmatpush1.msra.mxu0 %v504
  %506 = vmatprep.subr.mxu0 0.0
  %v507 = vand.u32 %v20, 4294901760
  %v508 = vsub.f32 %v20, %v507
  %v509 = vand.u32 %v508, 4294901760
  %510 = vmatpush1.msra.mxu0 %v509
  %511 = vmatprep.subr.mxu0 0.0
  %v512 = vand.u32 %v19, 4294901760
  %v513 = vsub.f32 %v19, %v512
  %v514 = vand.u32 %v513, 4294901760
  %515 = vmatpush1.msra.mxu0 %v514
  %516 = vmatprep.subr.mxu0 0.0
  %v517 = vand.u32 %v18, 4294901760
  %v518 = vsub.f32 %v18, %v517
  %v519 = vand.u32 %v518, 4294901760
  %520 = vmatpush1.msra.mxu0 %v519
  %521 = vmatprep.subr.mxu0 0.0
  %v522 = vand.u32 %v17, 4294901760
  %v523 = vsub.f32 %v17, %v522
  %v524 = vand.u32 %v523, 4294901760
  %525 = vmatpush1.msra.mxu0 %v524
  %526 = vmatprep.subr.mxu0 0.0
  %v527 = vand.u32 %v16, 4294901760
  %v528 = vsub.f32 %v16, %v527
  %v529 = vand.u32 %v528, 4294901760
  %530 = vmatpush1.msra.mxu0 %v529
  %531 = vmatprep.subr.mxu0 0.0
  %v532 = vand.u32 %v15, 4294901760
  %v533 = vsub.f32 %v15, %v532
  %v534 = vand.u32 %v533, 4294901760
  %535 = vmatpush1.msra.mxu0 %v534
  %536 = vmatprep.subr.mxu0 0.0
  %v537 = vand.u32 %v14, 4294901760
  %v538 = vsub.f32 %v14, %v537
  %v539 = vand.u32 %v538, 4294901760
  %540 = vmatpush1.msra.mxu0 %v539
  %541 = vmatprep.subr.mxu0 0.0
  %v542 = vand.u32 %v13, 4294901760
  %v543 = vsub.f32 %v13, %v542
  %v544 = vand.u32 %v543, 4294901760
  %545 = vmatpush1.msra.mxu0 %v544
  %546 = vmatprep.subr.mxu0 0.0
  %v547 = vand.u32 %v12, 4294901760
  %v548 = vsub.f32 %v12, %v547
  %v549 = vand.u32 %v548, 4294901760
  %550 = vmatpush1.msra.mxu0 %v549
  %551 = vmatprep.subr.mxu0 0.0
  %552 = vmatpush2.msra.mxu0 0.0
  %553 = vmatprep.subr.mxu0 0.0
  %554 = vmatpush2.msra.mxu0 0.0
  %555 = vmatprep.subr.mxu0 0.0
  %556 = vmatpush2.msra.mxu0 0.0
  %557 = vmatprep.subr.mxu0 0.0
  %558 = vmatpush2.msra.mxu0 0.0
  %559 = vmatprep.subr.mxu0 0.0
  %560 = vmatpush2.msra.mxu0 0.0
  %561 = vmatprep.subr.mxu0 0.0
  %562 = vmatpush2.msra.mxu0 0.0
  %563 = vmatprep.subr.mxu0 0.0
  %564 = vmatpush2.msra.mxu0 0.0
  %565 = vmatprep.subr.mxu0 0.0
  %566 = vmatpush2.msra.mxu0 0.0
  %567 = vmatprep.subr.mxu0 0.0
  %568 = vmatpush2.msra.mxu0 0.0
  %569 = vmatprep.subr.mxu0 0.0
  %570 = vmatpush2.msra.mxu0 0.0
  %571 = vmatprep.subr.mxu0 0.0
  %572 = vmatpush2.msra.mxu0 0.0
  %573 = vmatprep.subr.mxu0 0.0
  %574 = vmatpush2.msra.mxu0 0.0
  %575 = vmatprep.subr.mxu0 0.0
  %576 = vmatpush2.msra.mxu0 0.0
  %577 = vmatprep.subr.mxu0 0.0
  %578 = vmatpush2.msra.mxu0 0.0
  %579 = vmatprep.subr.mxu0 0.0
  %580 = vmatpush2.msra.mxu0 0.0
  %581 = vmatprep.subr.mxu0 0.0
  %582 = vmatpush2.msra.mxu0 0.0
  %583 = vmatprep.mubr.f32.mxu0 0.0
  %v584 = vand.u32 %v35, 4294901760
  %585 = vmatmul.mubr.f32.gmra.mxu0 %v584
  %v586 = vpop.f32.mrf.mxu0
  %v587 = vadd.f32 %v468, %v586
  %v588 = vpop.f32.mrf.mxu0
  %589 = vdwg.mxu0
  %590 = vmatprep.subr.mxu0 0.0
  %v591 = vand.u32 %v27, 4294901760
  %592 = vmatpush1.msra.mxu0 %v591
  %593 = vmatprep.subr.mxu0 0.0
  %v594 = vand.u32 %v26, 4294901760
  %595 = vmatpush1.msra.mxu0 %v594
  %596 = vmatprep.subr.mxu0 0.0
  %v597 = vand.u32 %v25, 4294901760
  %598 = vmatpush1.msra.mxu0 %v597
  %599 = vmatprep.subr.mxu0 0.0
  %v600 = vand.u32 %v24, 4294901760
  %601 = vmatpush1.msra.mxu0 %v600
  %602 = vmatprep.subr.mxu0 0.0
  %v603 = vand.u32 %v23, 4294901760
  %604 = vmatpush1.msra.mxu0 %v603
  %605 = vmatprep.subr.mxu0 0.0
  %v606 = vand.u32 %v22, 4294901760
  %607 = vmatpush1.msra.mxu0 %v606
  %608 = vmatprep.subr.mxu0 0.0
  %v609 = vand.u32 %v21, 4294901760
  %610 = vmatpush1.msra.mxu0 %v609
  %611 = vmatprep.subr.mxu0 0.0
  %v612 = vand.u32 %v20, 4294901760
  %613 = vmatpush1.msra.mxu0 %v612
  %614 = vmatprep.subr.mxu0 0.0
  %v615 = vand.u32 %v19, 4294901760
  %616 = vmatpush1.msra.mxu0 %v615
  %617 = vmatprep.subr.mxu0 0.0
  %v618 = vand.u32 %v18, 4294901760
  %619 = vmatpush1.msra.mxu0 %v618
  %620 = vmatprep.subr.mxu0 0.0
  %v621 = vand.u32 %v17, 4294901760
  %622 = vmatpush1.msra.mxu0 %v621
  %623 = vmatprep.subr.mxu0 0.0
  %v624 = vand.u32 %v16, 4294901760
  %625 = vmatpush1.msra.mxu0 %v624
  %626 = vmatprep.subr.mxu0 0.0
  %v627 = vand.u32 %v15, 4294901760
  %628 = vmatpush1.msra.mxu0 %v627
  %629 = vmatprep.subr.mxu0 0.0
  %v630 = vand.u32 %v14, 4294901760
  %631 = vmatpush1.msra.mxu0 %v630
  %632 = vmatprep.subr.mxu0 0.0
  %v633 = vand.u32 %v13, 4294901760
  %634 = vmatpush1.msra.mxu0 %v633
  %635 = vmatprep.subr.mxu0 0.0
  %v636 = vand.u32 %v12, 4294901760
  %637 = vmatpush1.msra.mxu0 %v636
  %638 = vmatprep.subr.mxu0 0.0
  %639 = vmatpush2.msra.mxu0 0.0
  %640 = vmatprep.subr.mxu0 0.0
  %641 = vmatpush2.msra.mxu0 0.0
  %642 = vmatprep.subr.mxu0 0.0
  %643 = vmatpush2.msra.mxu0 0.0
  %644 = vmatprep.subr.mxu0 0.0
  %645 = vmatpush2.msra.mxu0 0.0
  %646 = vmatprep.subr.mxu0 0.0
  %647 = vmatpush2.msra.mxu0 0.0
  %648 = vmatprep.subr.mxu0 0.0
  %649 = vmatpush2.msra.mxu0 0.0
  %650 = vmatprep.subr.mxu0 0.0
  %651 = vmatpush2.msra.mxu0 0.0
  %652 = vmatprep.subr.mxu0 0.0
  %653 = vmatpush2.msra.mxu0 0.0
  %654 = vmatprep.subr.mxu0 0.0
  %655 = vmatpush2.msra.mxu0 0.0
  %656 = vmatprep.subr.mxu0 0.0
  %657 = vmatpush2.msra.mxu0 0.0
  %658 = vmatprep.subr.mxu0 0.0
  %659 = vmatpush2.msra.mxu0 0.0
  %660 = vmatprep.subr.mxu0 0.0
  %661 = vmatpush2.msra.mxu0 0.0
  %662 = vmatprep.subr.mxu0 0.0
  %663 = vmatpush2.msra.mxu0 0.0
  %664 = vmatprep.subr.mxu0 0.0
  %665 = vmatpush2.msra.mxu0 0.0
  %666 = vmatprep.subr.mxu0 0.0
  %667 = vmatpush2.msra.mxu0 0.0
  %668 = vmatprep.subr.mxu0 0.0
  %669 = vmatpush2.msra.mxu0 0.0
  %670 = vmatprep.mubr.f32.mxu0 0.0
  %v671 = vand.u32 %v35, 4294901760
  %672 = vmatmul.mubr.f32.gmra.mxu0 %v671
  %v673 = vpop.f32.mrf.mxu0
  %v674 = vadd.f32 %v587, %v673
  %v675 = vpop.f32.mrf.mxu0
  %676 = vdwg.mxu0
  %vm677 = vcmask 261120
  %678 = vst.msk [vmem:[%s2] sm:$0xff] %vm677, %v674
  %679 = vset.pattern.permute.xlu0 1
  %680 = vperm.xlu0 %679, %v11
  %v681 = vpop.permute.xlu0 %680
  %vm682 = vcmp.eq.s32.totalorder %v29, %v681
  %v683 = vsel %vm682, 1, 0
  %v684 = vcvt.s32.f32 %v683
  %685 = vmatprep.subr.mxu0 0.0
  %v686 = vand.u32 %v27, 4294901760
  %687 = vmatpush1.msra.mxu0 %v686
  %688 = vmatprep.subr.mxu0 0.0
  %v689 = vand.u32 %v26, 4294901760
  %690 = vmatpush1.msra.mxu0 %v689
  %691 = vmatprep.subr.mxu0 0.0
  %v692 = vand.u32 %v25, 4294901760
  %693 = vmatpush1.msra.mxu0 %v692
  %694 = vmatprep.subr.mxu0 0.0
  %v695 = vand.u32 %v24, 4294901760
  %696 = vmatpush1.msra.mxu0 %v695
  %697 = vmatprep.subr.mxu0 0.0
  %v698 = vand.u32 %v23, 4294901760
  %699 = vmatpush1.msra.mxu0 %v698
  %700 = vmatprep.subr.mxu0 0.0
  %v701 = vand.u32 %v22, 4294901760
  %702 = vmatpush1.msra.mxu0 %v701
  %703 = vmatprep.subr.mxu0 0.0
  %v704 = vand.u32 %v21, 4294901760
  %705 = vmatpush1.msra.mxu0 %v704
  %706 = vmatprep.subr.mxu0 0.0
  %v707 = vand.u32 %v20, 4294901760
  %708 = vmatpush1.msra.mxu0 %v707
  %709 = vmatprep.subr.mxu0 0.0
  %v710 = vand.u32 %v19, 4294901760
  %711 = vmatpush1.msra.mxu0 %v710
  %712 = vmatprep.subr.mxu0 0.0
  %v713 = vand.u32 %v18, 4294901760
  %714 = vmatpush1.msra.mxu0 %v713
  %715 = vmatprep.subr.mxu0 0.0
  %v716 = vand.u32 %v17, 4294901760
  %717 = vmatpush1.msra.mxu0 %v716
  %718 = vmatprep.subr.mxu0 0.0
  %v719 = vand.u32 %v16, 4294901760
  %720 = vmatpush1.msra.mxu0 %v719
  %721 = vmatprep.subr.mxu0 0.0
  %v722 = vand.u32 %v15, 4294901760
  %723 = vmatpush1.msra.mxu0 %v722
  %724 = vmatprep.subr.mxu0 0.0
  %v725 = vand.u32 %v14, 4294901760
  %726 = vmatpush1.msra.mxu0 %v725
  %727 = vmatprep.subr.mxu0 0.0
  %v728 = vand.u32 %v13, 4294901760
  %729 = vmatpush1.msra.mxu0 %v728
  %730 = vmatprep.subr.mxu0 0.0
  %v731 = vand.u32 %v12, 4294901760
  %732 = vmatpush1.msra.mxu0 %v731
  %733 = vmatprep.subr.mxu0 0.0
  %734 = vmatpush2.msra.mxu0 0.0
  %735 = vmatprep.subr.mxu0 0.0
  %736 = vmatpush2.msra.mxu0 0.0
  %737 = vmatprep.subr.mxu0 0.0
  %738 = vmatpush2.msra.mxu0 0.0
  %739 = vmatprep.subr.mxu0 0.0
  %740 = vmatpush2.msra.mxu0 0.0
  %741 = vmatprep.subr.mxu0 0.0
  %742 = vmatpush2.msra.mxu0 0.0
  %743 = vmatprep.subr.mxu0 0.0
  %744 = vmatpush2.msra.mxu0 0.0
  %745 = vmatprep.subr.mxu0 0.0
  %746 = vmatpush2.msra.mxu0 0.0
  %747 = vmatprep.subr.mxu0 0.0
  %748 = vmatpush2.msra.mxu0 0.0
  %749 = vmatprep.subr.mxu0 0.0
  %750 = vmatpush2.msra.mxu0 0.0
  %751 = vmatprep.subr.mxu0 0.0
  %752 = vmatpush2.msra.mxu0 0.0
  %753 = vmatprep.subr.mxu0 0.0
  %754 = vmatpush2.msra.mxu0 0.0
  %755 = vmatprep.subr.mxu0 0.0
  %756 = vmatpush2.msra.mxu0 0.0
  %757 = vmatprep.subr.mxu0 0.0
  %758 = vmatpush2.msra.mxu0 0.0
  %759 = vmatprep.subr.mxu0 0.0
  %760 = vmatpush2.msra.mxu0 0.0
  %761 = vmatprep.subr.mxu0 0.0
  %762 = vmatpush2.msra.mxu0 0.0
  %763 = vmatprep.subr.mxu0 0.0
  %764 = vmatpush2.msra.mxu0 0.0
  %765 = vmatprep.mubr.f32.mxu0 0.0
  %v766 = vand.u32 %v684, 4294901760
  %v767 = vsub.f32 %v684, %v766
  %v768 = vand.u32 %v767, 4294901760
  %v769 = vsub.f32 %v767, %v768
  %v770 = vand.u32 %v769, 4294901760
  %771 = vmatmul.mubr.f32.gmra.mxu0 %v770
  %v772 = vpop.f32.mrf.mxu0
  %v773 = vadd.f32 0.0, %v772
  %v774 = vpop.f32.mrf.mxu0
  %775 = vdwg.mxu0
  %776 = vmatprep.subr.mxu0 0.0
  %v777 = vand.u32 %v27, 4294901760
  %v778 = vsub.f32 %v27, %v777
  %v779 = vand.u32 %v778, 4294901760
  %v780 = vsub.f32 %v778, %v779
  %v781 = vand.u32 %v780, 4294901760
  %782 = vmatpush1.msra.mxu0 %v781
  %783 = vmatprep.subr.mxu0 0.0
  %v784 = vand.u32 %v26, 4294901760
  %v785 = vsub.f32 %v26, %v784
  %v786 = vand.u32 %v785, 4294901760
  %v787 = vsub.f32 %v785, %v786
  %v788 = vand.u32 %v787, 4294901760
  %789 = vmatpush1.msra.mxu0 %v788
  %790 = vmatprep.subr.mxu0 0.0
  %v791 = vand.u32 %v25, 4294901760
  %v792 = vsub.f32 %v25, %v791
  %v793 = vand.u32 %v792, 4294901760
  %v794 = vsub.f32 %v792, %v793
  %v795 = vand.u32 %v794, 4294901760
  %796 = vmatpush1.msra.mxu0 %v795
  %797 = vmatprep.subr.mxu0 0.0
  %v798 = vand.u32 %v24, 4294901760
  %v799 = vsub.f32 %v24, %v798
  %v800 = vand.u32 %v799, 4294901760
  %v801 = vsub.f32 %v799, %v800
  %v802 = vand.u32 %v801, 4294901760
  %803 = vmatpush1.msra.mxu0 %v802
  %804 = vmatprep.subr.mxu0 0.0
  %v805 = vand.u32 %v23, 4294901760
  %v806 = vsub.f32 %v23, %v805
  %v807 = vand.u32 %v806, 4294901760
  %v808 = vsub.f32 %v806, %v807
  %v809 = vand.u32 %v808, 4294901760
  %810 = vmatpush1.msra.mxu0 %v809
  %811 = vmatprep.subr.mxu0 0.0
  %v812 = vand.u32 %v22, 4294901760
  %v813 = vsub.f32 %v22, %v812
  %v814 = vand.u32 %v813, 4294901760
  %v815 = vsub.f32 %v813, %v814
  %v816 = vand.u32 %v815, 4294901760
  %817 = vmatpush1.msra.mxu0 %v816
  %818 = vmatprep.subr.mxu0 0.0
  %v819 = vand.u32 %v21, 4294901760
  %v820 = vsub.f32 %v21, %v819
  %v821 = vand.u32 %v820, 4294901760
  %v822 = vsub.f32 %v820, %v821
  %v823 = vand.u32 %v822, 4294901760
  %824 = vmatpush1.msra.mxu0 %v823
  %825 = vmatprep.subr.mxu0 0.0
  %v826 = vand.u32 %v20, 4294901760
  %v827 = vsub.f32 %v20, %v826
  %v828 = vand.u32 %v827, 4294901760
  %v829 = vsub.f32 %v827, %v828
  %v830 = vand.u32 %v829, 4294901760
  %831 = vmatpush1.msra.mxu0 %v830
  %832 = vmatprep.subr.mxu0 0.0
  %v833 = vand.u32 %v19, 4294901760
  %v834 = vsub.f32 %v19, %v833
  %v835 = vand.u32 %v834, 4294901760
  %v836 = vsub.f32 %v834, %v835
  %v837 = vand.u32 %v836, 4294901760
  %838 = vmatpush1.msra.mxu0 %v837
  %839 = vmatprep.subr.mxu0 0.0
  %v840 = vand.u32 %v18, 4294901760
  %v841 = vsub.f32 %v18, %v840
  %v842 = vand.u32 %v841, 4294901760
  %v843 = vsub.f32 %v841, %v842
  %v844 = vand.u32 %v843, 4294901760
  %845 = vmatpush1.msra.mxu0 %v844
  %846 = vmatprep.subr.mxu0 0.0
  %v847 = vand.u32 %v17, 4294901760
  %v848 = vsub.f32 %v17, %v847
  %v849 = vand.u32 %v848, 4294901760
  %v850 = vsub.f32 %v848, %v849
  %v851 = vand.u32 %v850, 4294901760
  %852 = vmatpush1.msra.mxu0 %v851
  %853 = vmatprep.subr.mxu0 0.0
  %v854 = vand.u32 %v16, 4294901760
  %v855 = vsub.f32 %v16, %v854
  %v856 = vand.u32 %v855, 4294901760
  %v857 = vsub.f32 %v855, %v856
  %v858 = vand.u32 %v857, 4294901760
  %859 = vmatpush1.msra.mxu0 %v858
  %860 = vmatprep.subr.mxu0 0.0
  %v861 = vand.u32 %v15, 4294901760
  %v862 = vsub.f32 %v15, %v861
  %v863 = vand.u32 %v862, 4294901760
  %v864 = vsub.f32 %v862, %v863
  %v865 = vand.u32 %v864, 4294901760
  %866 = vmatpush1.msra.mxu0 %v865
  %867 = vmatprep.subr.mxu0 0.0
  %v868 = vand.u32 %v14, 4294901760
  %v869 = vsub.f32 %v14, %v868
  %v870 = vand.u32 %v869, 4294901760
  %v871 = vsub.f32 %v869, %v870
  %v872 = vand.u32 %v871, 4294901760
  %873 = vmatpush1.msra.mxu0 %v872
  %874 = vmatprep.subr.mxu0 0.0
  %v875 = vand.u32 %v13, 4294901760
  %v876 = vsub.f32 %v13, %v875
  %v877 = vand.u32 %v876, 4294901760
  %v878 = vsub.f32 %v876, %v877
  %v879 = vand.u32 %v878, 4294901760
  %880 = vmatpush1.msra.mxu0 %v879
  %881 = vmatprep.subr.mxu0 0.0
  %v882 = vand.u32 %v12, 4294901760
  %v883 = vsub.f32 %v12, %v882
  %v884 = vand.u32 %v883, 4294901760
  %v885 = vsub.f32 %v883, %v884
  %v886 = vand.u32 %v885, 4294901760
  %887 = vmatpush1.msra.mxu0 %v886
  %888 = vmatprep.subr.mxu0 0.0
  %889 = vmatpush2.msra.mxu0 0.0
  %890 = vmatprep.subr.mxu0 0.0
  %891 = vmatpush2.msra.mxu0 0.0
  %892 = vmatprep.subr.mxu0 0.0
  %893 = vmatpush2.msra.mxu0 0.0
  %894 = vmatprep.subr.mxu0 0.0
  %895 = vmatpush2.msra.mxu0 0.0
  %896 = vmatprep.subr.mxu0 0.0
  %897 = vmatpush2.msra.mxu0 0.0
  %898 = vmatprep.subr.mxu0 0.0
  %899 = vmatpush2.msra.mxu0 0.0
  %900 = vmatprep.subr.mxu0 0.0
  %901 = vmatpush2.msra.mxu0 0.0
  %902 = vmatprep.subr.mxu0 0.0
  %903 = vmatpush2.msra.mxu0 0.0
  %904 = vmatprep.subr.mxu0 0.0
  %905 = vmatpush2.msra.mxu0 0.0
  %906 = vmatprep.subr.mxu0 0.0
  %907 = vmatpush2.msra.mxu0 0.0
  %908 = vmatprep.subr.mxu0 0.0
  %909 = vmatpush2.msra.mxu0 0.0
  %910 = vmatprep.subr.mxu0 0.0
  %911 = vmatpush2.msra.mxu0 0.0
  %912 = vmatprep.subr.mxu0 0.0
  %913 = vmatpush2.msra.mxu0 0.0
  %914 = vmatprep.subr.mxu0 0.0
  %915 = vmatpush2.msra.mxu0 0.0
  %916 = vmatprep.subr.mxu0 0.0
  %917 = vmatpush2.msra.mxu0 0.0
  %918 = vmatprep.subr.mxu0 0.0
  %919 = vmatpush2.msra.mxu0 0.0
  %920 = vmatprep.mubr.f32.mxu0 0.0
  %v921 = vand.u32 %v684, 4294901760
  %922 = vmatmul.mubr.f32.gmra.mxu0 %v921
  %v923 = vpop.f32.mrf.mxu0
  %v924 = vadd.f32 %v773, %v923
  %v925 = vpop.f32.mrf.mxu0
  %926 = vdwg.mxu0
  %927 = vmatprep.subr.mxu0 0.0
  %v928 = vand.u32 %v27, 4294901760
  %v929 = vsub.f32 %v27, %v928
  %930 = vmatpush1.msra.mxu0 %v929
  %931 = vmatprep.subr.mxu0 0.0
  %v932 = vand.u32 %v26, 4294901760
  %v933 = vsub.f32 %v26, %v932
  %934 = vmatpush1.msra.mxu0 %v933
  %935 = vmatprep.subr.mxu0 0.0
  %v936 = vand.u32 %v25, 4294901760
  %v937 = vsub.f32 %v25, %v936
  %938 = vmatpush1.msra.mxu0 %v937
  %939 = vmatprep.subr.mxu0 0.0
  %v940 = vand.u32 %v24, 4294901760
  %v941 = vsub.f32 %v24, %v940
  %942 = vmatpush1.msra.mxu0 %v941
  %943 = vmatprep.subr.mxu0 0.0
  %v944 = vand.u32 %v23, 4294901760
  %v945 = vsub.f32 %v23, %v944
  %946 = vmatpush1.msra.mxu0 %v945
  %947 = vmatprep.subr.mxu0 0.0
  %v948 = vand.u32 %v22, 4294901760
  %v949 = vsub.f32 %v22, %v948
  %950 = vmatpush1.msra.mxu0 %v949
  %951 = vmatprep.subr.mxu0 0.0
  %v952 = vand.u32 %v21, 4294901760
  %v953 = vsub.f32 %v21, %v952
  %954 = vmatpush1.msra.mxu0 %v953
  %955 = vmatprep.subr.mxu0 0.0
  %v956 = vand.u32 %v20, 4294901760
  %v957 = vsub.f32 %v20, %v956
  %958 = vmatpush1.msra.mxu0 %v957
  %959 = vmatprep.subr.mxu0 0.0
  %v960 = vand.u32 %v19, 4294901760
  %v961 = vsub.f32 %v19, %v960
  %962 = vmatpush1.msra.mxu0 %v961
  %963 = vmatprep.subr.mxu0 0.0
  %v964 = vand.u32 %v18, 4294901760
  %v965 = vsub.f32 %v18, %v964
  %966 = vmatpush1.msra.mxu0 %v965
  %967 = vmatprep.subr.mxu0 0.0
  %v968 = vand.u32 %v17, 4294901760
  %v969 = vsub.f32 %v17, %v968
  %970 = vmatpush1.msra.mxu0 %v969
  %971 = vmatprep.subr.mxu0 0.0
  %v972 = vand.u32 %v16, 4294901760
  %v973 = vsub.f32 %v16, %v972
  %974 = vmatpush1.msra.mxu0 %v973
  %975 = vmatprep.subr.mxu0 0.0
  %v976 = vand.u32 %v15, 4294901760
  %v977 = vsub.f32 %v15, %v976
  %978 = vmatpush1.msra.mxu0 %v977
  %979 = vmatprep.subr.mxu0 0.0
  %v980 = vand.u32 %v14, 4294901760
  %v981 = vsub.f32 %v14, %v980
  %982 = vmatpush1.msra.mxu0 %v981
  %983 = vmatprep.subr.mxu0 0.0
  %v984 = vand.u32 %v13, 4294901760
  %v985 = vsub.f32 %v13, %v984
  %986 = vmatpush1.msra.mxu0 %v985
  %987 = vmatprep.subr.mxu0 0.0
  %v988 = vand.u32 %v12, 4294901760
  %v989 = vsub.f32 %v12, %v988
  %990 = vmatpush1.msra.mxu0 %v989
  %991 = vmatprep.subr.mxu0 0.0
  %992 = vmatpush2.msra.mxu0 0.0
  %993 = vmatprep.subr.mxu0 0.0
  %994 = vmatpush2.msra.mxu0 0.0
  %995 = vmatprep.subr.mxu0 0.0
  %996 = vmatpush2.msra.mxu0 0.0
  %997 = vmatprep.subr.mxu0 0.0
  %998 = vmatpush2.msra.mxu0 0.0
  %999 = vmatprep.subr.mxu0 0.0
  %1000 = vmatpush2.msra.mxu0 0.0
  %1001 = vmatprep.subr.mxu0 0.0
  %1002 = vmatpush2.msra.mxu0 0.0
  %1003 = vmatprep.subr.mxu0 0.0
  %1004 = vmatpush2.msra.mxu0 0.0
  %1005 = vmatprep.subr.mxu0 0.0
  %1006 = vmatpush2.msra.mxu0 0.0
  %1007 = vmatprep.subr.mxu0 0.0
  %1008 = vmatpush2.msra.mxu0 0.0
  %1009 = vmatprep.subr.mxu0 0.0
  %1010 = vmatpush2.msra.mxu0 0.0
  %1011 = vmatprep.subr.mxu0 0.0
  %1012 = vmatpush2.msra.mxu0 0.0
  %1013 = vmatprep.subr.mxu0 0.0
  %1014 = vmatpush2.msra.mxu0 0.0
  %1015 = vmatprep.subr.mxu0 0.0
  %1016 = vmatpush2.msra.mxu0 0.0
  %1017 = vmatprep.subr.mxu0 0.0
  %1018 = vmatpush2.msra.mxu0 0.0
  %1019 = vmatprep.subr.mxu0 0.0
  %1020 = vmatpush2.msra.mxu0 0.0
  %1021 = vmatprep.subr.mxu0 0.0
  %1022 = vmatpush2.msra.mxu0 0.0
  %1023 = vmatprep.mubr.f32.mxu0 0.0
  %v1024 = vand.u32 %v684, 4294901760
  %v1025 = vsub.f32 %v684, %v1024
  %1026 = vmatmul.mubr.f32.gmra.mxu0 %v1025
  %v1027 = vpop.f32.mrf.mxu0
  %v1028 = vadd.f32 %v924, %v1027
  %v1029 = vpop.f32.mrf.mxu0
  %1030 = vdwg.mxu0
  %1031 = vmatprep.subr.mxu0 0.0
  %v1032 = vand.u32 %v27, 4294901760
  %1033 = vmatpush1.msra.mxu0 %v1032
  %1034 = vmatprep.subr.mxu0 0.0
  %v1035 = vand.u32 %v26, 4294901760
  %1036 = vmatpush1.msra.mxu0 %v1035
  %1037 = vmatprep.subr.mxu0 0.0
  %v1038 = vand.u32 %v25, 4294901760
  %1039 = vmatpush1.msra.mxu0 %v1038
  %1040 = vmatprep.subr.mxu0 0.0
  %v1041 = vand.u32 %v24, 4294901760
  %1042 = vmatpush1.msra.mxu0 %v1041
  %1043 = vmatprep.subr.mxu0 0.0
  %v1044 = vand.u32 %v23, 4294901760
  %1045 = vmatpush1.msra.mxu0 %v1044
  %1046 = vmatprep.subr.mxu0 0.0
  %v1047 = vand.u32 %v22, 4294901760
  %1048 = vmatpush1.msra.mxu0 %v1047
  %1049 = vmatprep.subr.mxu0 0.0
  %v1050 = vand.u32 %v21, 4294901760
  %1051 = vmatpush1.msra.mxu0 %v1050
  %1052 = vmatprep.subr.mxu0 0.0
  %v1053 = vand.u32 %v20, 4294901760
  %1054 = vmatpush1.msra.mxu0 %v1053
  %1055 = vmatprep.subr.mxu0 0.0
  %v1056 = vand.u32 %v19, 4294901760
  %1057 = vmatpush1.msra.mxu0 %v1056
  %1058 = vmatprep.subr.mxu0 0.0
  %v1059 = vand.u32 %v18, 4294901760
  %1060 = vmatpush1.msra.mxu0 %v1059
  %1061 = vmatprep.subr.mxu0 0.0
  %v1062 = vand.u32 %v17, 4294901760
  %1063 = vmatpush1.msra.mxu0 %v1062
  %1064 = vmatprep.subr.mxu0 0.0
  %v1065 = vand.u32 %v16, 4294901760
  %1066 = vmatpush1.msra.mxu0 %v1065
  %1067 = vmatprep.subr.mxu0 0.0
  %v1068 = vand.u32 %v15, 4294901760
  %1069 = vmatpush1.msra.mxu0 %v1068
  %1070 = vmatprep.subr.mxu0 0.0
  %v1071 = vand.u32 %v14, 4294901760
  %1072 = vmatpush1.msra.mxu0 %v1071
  %1073 = vmatprep.subr.mxu0 0.0
  %v1074 = vand.u32 %v13, 4294901760
  %1075 = vmatpush1.msra.mxu0 %v1074
  %1076 = vmatprep.subr.mxu0 0.0
  %v1077 = vand.u32 %v12, 4294901760
  %1078 = vmatpush1.msra.mxu0 %v1077
  %1079 = vmatprep.subr.mxu0 0.0
  %1080 = vmatpush2.msra.mxu0 0.0
  %1081 = vmatprep.subr.mxu0 0.0
  %1082 = vmatpush2.msra.mxu0 0.0
  %1083 = vmatprep.subr.mxu0 0.0
  %1084 = vmatpush2.msra.mxu0 0.0
  %1085 = vmatprep.subr.mxu0 0.0
  %1086 = vmatpush2.msra.mxu0 0.0
  %1087 = vmatprep.subr.mxu0 0.0
  %1088 = vmatpush2.msra.mxu0 0.0
  %1089 = vmatprep.subr.mxu0 0.0
  %1090 = vmatpush2.msra.mxu0 0.0
  %1091 = vmatprep.subr.mxu0 0.0
  %1092 = vmatpush2.msra.mxu0 0.0
  %1093 = vmatprep.subr.mxu0 0.0
  %1094 = vmatpush2.msra.mxu0 0.0
  %1095 = vmatprep.subr.mxu0 0.0
  %1096 = vmatpush2.msra.mxu0 0.0
  %1097 = vmatprep.subr.mxu0 0.0
  %1098 = vmatpush2.msra.mxu0 0.0
  %1099 = vmatprep.subr.mxu0 0.0
  %1100 = vmatpush2.msra.mxu0 0.0
  %1101 = vmatprep.subr.mxu0 0.0
  %1102 = vmatpush2.msra.mxu0 0.0
  %1103 = vmatprep.subr.mxu0 0.0
  %1104 = vmatpush2.msra.mxu0 0.0
  %1105 = vmatprep.subr.mxu0 0.0
  %1106 = vmatpush2.msra.mxu0 0.0
  %1107 = vmatprep.subr.mxu0 0.0
  %1108 = vmatpush2.msra.mxu0 0.0
  %1109 = vmatprep.subr.mxu0 0.0
  %1110 = vmatpush2.msra.mxu0 0.0
  %1111 = vmatprep.mubr.f32.mxu0 0.0
  %v1112 = vand.u32 %v684, 4294901760
  %v1113 = vsub.f32 %v684, %v1112
  %v1114 = vand.u32 %v1113, 4294901760
  %1115 = vmatmul.mubr.f32.gmra.mxu0 %v1114
  %v1116 = vpop.f32.mrf.mxu0
  %v1117 = vadd.f32 %v1028, %v1116
  %v1118 = vpop.f32.mrf.mxu0
  %1119 = vdwg.mxu0
  %1120 = vmatprep.subr.mxu0 0.0
  %v1121 = vand.u32 %v27, 4294901760
  %v1122 = vsub.f32 %v27, %v1121
  %v1123 = vand.u32 %v1122, 4294901760
  %1124 = vmatpush1.msra.mxu0 %v1123
  %1125 = vmatprep.subr.mxu0 0.0
  %v1126 = vand.u32 %v26, 4294901760
  %v1127 = vsub.f32 %v26, %v1126
  %v1128 = vand.u32 %v1127, 4294901760
  %1129 = vmatpush1.msra.mxu0 %v1128
  %1130 = vmatprep.subr.mxu0 0.0
  %v1131 = vand.u32 %v25, 4294901760
  %v1132 = vsub.f32 %v25, %v1131
  %v1133 = vand.u32 %v1132, 4294901760
  %1134 = vmatpush1.msra.mxu0 %v1133
  %1135 = vmatprep.subr.mxu0 0.0
  %v1136 = vand.u32 %v24, 4294901760
  %v1137 = vsub.f32 %v24, %v1136
  %v1138 = vand.u32 %v1137, 4294901760
  %1139 = vmatpush1.msra.mxu0 %v1138
  %1140 = vmatprep.subr.mxu0 0.0
  %v1141 = vand.u32 %v23, 4294901760
  %v1142 = vsub.f32 %v23, %v1141
  %v1143 = vand.u32 %v1142, 4294901760
  %1144 = vmatpush1.msra.mxu0 %v1143
  %1145 = vmatprep.subr.mxu0 0.0
  %v1146 = vand.u32 %v22, 4294901760
  %v1147 = vsub.f32 %v22, %v1146
  %v1148 = vand.u32 %v1147, 4294901760
  %1149 = vmatpush1.msra.mxu0 %v1148
  %1150 = vmatprep.subr.mxu0 0.0
  %v1151 = vand.u32 %v21, 4294901760
  %v1152 = vsub.f32 %v21, %v1151
  %v1153 = vand.u32 %v1152, 4294901760
  %1154 = vmatpush1.msra.mxu0 %v1153
  %1155 = vmatprep.subr.mxu0 0.0
  %v1156 = vand.u32 %v20, 4294901760
  %v1157 = vsub.f32 %v20, %v1156
  %v1158 = vand.u32 %v1157, 4294901760
  %1159 = vmatpush1.msra.mxu0 %v1158
  %1160 = vmatprep.subr.mxu0 0.0
  %v1161 = vand.u32 %v19, 4294901760
  %v1162 = vsub.f32 %v19, %v1161
  %v1163 = vand.u32 %v1162, 4294901760
  %1164 = vmatpush1.msra.mxu0 %v1163
  %1165 = vmatprep.subr.mxu0 0.0
  %v1166 = vand.u32 %v18, 4294901760
  %v1167 = vsub.f32 %v18, %v1166
  %v1168 = vand.u32 %v1167, 4294901760
  %1169 = vmatpush1.msra.mxu0 %v1168
  %1170 = vmatprep.subr.mxu0 0.0
  %v1171 = vand.u32 %v17, 4294901760
  %v1172 = vsub.f32 %v17, %v1171
  %v1173 = vand.u32 %v1172, 4294901760
  %1174 = vmatpush1.msra.mxu0 %v1173
  %1175 = vmatprep.subr.mxu0 0.0
  %v1176 = vand.u32 %v16, 4294901760
  %v1177 = vsub.f32 %v16, %v1176
  %v1178 = vand.u32 %v1177, 4294901760
  %1179 = vmatpush1.msra.mxu0 %v1178
  %1180 = vmatprep.subr.mxu0 0.0
  %v1181 = vand.u32 %v15, 4294901760
  %v1182 = vsub.f32 %v15, %v1181
  %v1183 = vand.u32 %v1182, 4294901760
  %1184 = vmatpush1.msra.mxu0 %v1183
  %1185 = vmatprep.subr.mxu0 0.0
  %v1186 = vand.u32 %v14, 4294901760
  %v1187 = vsub.f32 %v14, %v1186
  %v1188 = vand.u32 %v1187, 4294901760
  %1189 = vmatpush1.msra.mxu0 %v1188
  %1190 = vmatprep.subr.mxu0 0.0
  %v1191 = vand.u32 %v13, 4294901760
  %v1192 = vsub.f32 %v13, %v1191
  %v1193 = vand.u32 %v1192, 4294901760
  %1194 = vmatpush1.msra.mxu0 %v1193
  %1195 = vmatprep.subr.mxu0 0.0
  %v1196 = vand.u32 %v12, 4294901760
  %v1197 = vsub.f32 %v12, %v1196
  %v1198 = vand.u32 %v1197, 4294901760
  %1199 = vmatpush1.msra.mxu0 %v1198
  %1200 = vmatprep.subr.mxu0 0.0
  %1201 = vmatpush2.msra.mxu0 0.0
  %1202 = vmatprep.subr.mxu0 0.0
  %1203 = vmatpush2.msra.mxu0 0.0
  %1204 = vmatprep.subr.mxu0 0.0
  %1205 = vmatpush2.msra.mxu0 0.0
  %1206 = vmatprep.subr.mxu0 0.0
  %1207 = vmatpush2.msra.mxu0 0.0
  %1208 = vmatprep.subr.mxu0 0.0
  %1209 = vmatpush2.msra.mxu0 0.0
  %1210 = vmatprep.subr.mxu0 0.0
  %1211 = vmatpush2.msra.mxu0 0.0
  %1212 = vmatprep.subr.mxu0 0.0
  %1213 = vmatpush2.msra.mxu0 0.0
  %1214 = vmatprep.subr.mxu0 0.0
  %1215 = vmatpush2.msra.mxu0 0.0
  %1216 = vmatprep.subr.mxu0 0.0
  %1217 = vmatpush2.msra.mxu0 0.0
  %1218 = vmatprep.subr.mxu0 0.0
  %1219 = vmatpush2.msra.mxu0 0.0
  %1220 = vmatprep.subr.mxu0 0.0
  %1221 = vmatpush2.msra.mxu0 0.0
  %1222 = vmatprep.subr.mxu0 0.0
  %1223 = vmatpush2.msra.mxu0 0.0
  %1224 = vmatprep.subr.mxu0 0.0
  %1225 = vmatpush2.msra.mxu0 0.0
  %1226 = vmatprep.subr.mxu0 0.0
  %1227 = vmatpush2.msra.mxu0 0.0
  %1228 = vmatprep.subr.mxu0 0.0
  %1229 = vmatpush2.msra.mxu0 0.0
  %1230 = vmatprep.subr.mxu0 0.0
  %1231 = vmatpush2.msra.mxu0 0.0
  %1232 = vmatprep.mubr.f32.mxu0 0.0
  %v1233 = vand.u32 %v684, 4294901760
  %1234 = vmatmul.mubr.f32.gmra.mxu0 %v1233
  %v1235 = vpop.f32.mrf.mxu0
  %v1236 = vadd.f32 %v1117, %v1235
  %v1237 = vpop.f32.mrf.mxu0
  %1238 = vdwg.mxu0
  %1239 = vmatprep.subr.mxu0 0.0
  %v1240 = vand.u32 %v27, 4294901760
  %1241 = vmatpush1.msra.mxu0 %v1240
  %1242 = vmatprep.subr.mxu0 0.0
  %v1243 = vand.u32 %v26, 4294901760
  %1244 = vmatpush1.msra.mxu0 %v1243
  %1245 = vmatprep.subr.mxu0 0.0
  %v1246 = vand.u32 %v25, 4294901760
  %1247 = vmatpush1.msra.mxu0 %v1246
  %1248 = vmatprep.subr.mxu0 0.0
  %v1249 = vand.u32 %v24, 4294901760
  %1250 = vmatpush1.msra.mxu0 %v1249
  %1251 = vmatprep.subr.mxu0 0.0
  %v1252 = vand.u32 %v23, 4294901760
  %1253 = vmatpush1.msra.mxu0 %v1252
  %1254 = vmatprep.subr.mxu0 0.0
  %v1255 = vand.u32 %v22, 4294901760
  %1256 = vmatpush1.msra.mxu0 %v1255
  %1257 = vmatprep.subr.mxu0 0.0
  %v1258 = vand.u32 %v21, 4294901760
  %1259 = vmatpush1.msra.mxu0 %v1258
  %1260 = vmatprep.subr.mxu0 0.0
  %v1261 = vand.u32 %v20, 4294901760
  %1262 = vmatpush1.msra.mxu0 %v1261
  %1263 = vmatprep.subr.mxu0 0.0
  %v1264 = vand.u32 %v19, 4294901760
  %1265 = vmatpush1.msra.mxu0 %v1264
  %1266 = vmatprep.subr.mxu0 0.0
  %v1267 = vand.u32 %v18, 4294901760
  %1268 = vmatpush1.msra.mxu0 %v1267
  %1269 = vmatprep.subr.mxu0 0.0
  %v1270 = vand.u32 %v17, 4294901760
  %1271 = vmatpush1.msra.mxu0 %v1270
  %1272 = vmatprep.subr.mxu0 0.0
  %v1273 = vand.u32 %v16, 4294901760
  %1274 = vmatpush1.msra.mxu0 %v1273
  %1275 = vmatprep.subr.mxu0 0.0
  %v1276 = vand.u32 %v15, 4294901760
  %1277 = vmatpush1.msra.mxu0 %v1276
  %1278 = vmatprep.subr.mxu0 0.0
  %v1279 = vand.u32 %v14, 4294901760
  %1280 = vmatpush1.msra.mxu0 %v1279
  %1281 = vmatprep.subr.mxu0 0.0
  %v1282 = vand.u32 %v13, 4294901760
  %1283 = vmatpush1.msra.mxu0 %v1282
  %1284 = vmatprep.subr.mxu0 0.0
  %v1285 = vand.u32 %v12, 4294901760
  %1286 = vmatpush1.msra.mxu0 %v1285
  %1287 = vmatprep.subr.mxu0 0.0
  %1288 = vmatpush2.msra.mxu0 0.0
  %1289 = vmatprep.subr.mxu0 0.0
  %1290 = vmatpush2.msra.mxu0 0.0
  %1291 = vmatprep.subr.mxu0 0.0
  %1292 = vmatpush2.msra.mxu0 0.0
  %1293 = vmatprep.subr.mxu0 0.0
  %1294 = vmatpush2.msra.mxu0 0.0
  %1295 = vmatprep.subr.mxu0 0.0
  %1296 = vmatpush2.msra.mxu0 0.0
  %1297 = vmatprep.subr.mxu0 0.0
  %1298 = vmatpush2.msra.mxu0 0.0
  %1299 = vmatprep.subr.mxu0 0.0
  %1300 = vmatpush2.msra.mxu0 0.0
  %1301 = vmatprep.subr.mxu0 0.0
  %1302 = vmatpush2.msra.mxu0 0.0
  %1303 = vmatprep.subr.mxu0 0.0
  %1304 = vmatpush2.msra.mxu0 0.0
  %1305 = vmatprep.subr.mxu0 0.0
  %1306 = vmatpush2.msra.mxu0 0.0
  %1307 = vmatprep.subr.mxu0 0.0
  %1308 = vmatpush2.msra.mxu0 0.0
  %1309 = vmatprep.subr.mxu0 0.0
  %1310 = vmatpush2.msra.mxu0 0.0
  %1311 = vmatprep.subr.mxu0 0.0
  %1312 = vmatpush2.msra.mxu0 0.0
  %1313 = vmatprep.subr.mxu0 0.0
  %1314 = vmatpush2.msra.mxu0 0.0
  %1315 = vmatprep.subr.mxu0 0.0
  %1316 = vmatpush2.msra.mxu0 0.0
  %1317 = vmatprep.subr.mxu0 0.0
  %1318 = vmatpush2.msra.mxu0 0.0
  %1319 = vmatprep.mubr.f32.mxu0 0.0
  %v1320 = vand.u32 %v684, 4294901760
  %1321 = vmatmul.mubr.f32.gmra.mxu0 %v1320
  %v1322 = vpop.f32.mrf.mxu0
  %v1323 = vadd.f32 %v1236, %v1322
  %v1324 = vpop.f32.mrf.mxu0
  %1325 = vdwg.mxu0
  %1327 = vrot.lane.b32.xlu0 %v1323, 32
  %v1328 = vpop.permute.xlu0 %1327
  %vm1330 = vcmask 523520
  %1331 = vst.msk [vmem:[%s2] sm:$0xff] %vm1330, %v1328
  %1332 = vset.pattern.permute.xlu0 2
  %1333 = vperm.xlu0 %1332, %v11
  %v1334 = vpop.permute.xlu0 %1333
  %vm1335 = vcmp.eq.s32.totalorder %v29, %v1334
  %v1336 = vsel %vm1335, 1, 0
  %v1337 = vcvt.s32.f32 %v1336
  %1338 = vmatprep.subr.mxu0 0.0
  %v1339 = vand.u32 %v27, 4294901760
  %1340 = vmatpush1.msra.mxu0 %v1339
  %1341 = vmatprep.subr.mxu0 0.0
  %v1342 = vand.u32 %v26, 4294901760
  %1343 = vmatpush1.msra.mxu0 %v1342
  %1344 = vmatprep.subr.mxu0 0.0
  %v1345 = vand.u32 %v25, 4294901760
  %1346 = vmatpush1.msra.mxu0 %v1345
  %1347 = vmatprep.subr.mxu0 0.0
  %v1348 = vand.u32 %v24, 4294901760
  %1349 = vmatpush1.msra.mxu0 %v1348
  %1350 = vmatprep.subr.mxu0 0.0
  %v1351 = vand.u32 %v23, 4294901760
  %1352 = vmatpush1.msra.mxu0 %v1351
  %1353 = vmatprep.subr.mxu0 0.0
  %v1354 = vand.u32 %v22, 4294901760
  %1355 = vmatpush1.msra.mxu0 %v1354
  %1356 = vmatprep.subr.mxu0 0.0
  %v1357 = vand.u32 %v21, 4294901760
  %1358 = vmatpush1.msra.mxu0 %v1357
  %1359 = vmatprep.subr.mxu0 0.0
  %v1360 = vand.u32 %v20, 4294901760
  %1361 = vmatpush1.msra.mxu0 %v1360
  %1362 = vmatprep.subr.mxu0 0.0
  %v1363 = vand.u32 %v19, 4294901760
  %1364 = vmatpush1.msra.mxu0 %v1363
  %1365 = vmatprep.subr.mxu0 0.0
  %v1366 = vand.u32 %v18, 4294901760
  %1367 = vmatpush1.msra.mxu0 %v1366
  %1368 = vmatprep.subr.mxu0 0.0
  %v1369 = vand.u32 %v17, 4294901760
  %1370 = vmatpush1.msra.mxu0 %v1369
  %1371 = vmatprep.subr.mxu0 0.0
  %v1372 = vand.u32 %v16, 4294901760
  %1373 = vmatpush1.msra.mxu0 %v1372
  %1374 = vmatprep.subr.mxu0 0.0
  %v1375 = vand.u32 %v15, 4294901760
  %1376 = vmatpush1.msra.mxu0 %v1375
  %1377 = vmatprep.subr.mxu0 0.0
  %v1378 = vand.u32 %v14, 4294901760
  %1379 = vmatpush1.msra.mxu0 %v1378
  %1380 = vmatprep.subr.mxu0 0.0
  %v1381 = vand.u32 %v13, 4294901760
  %1382 = vmatpush1.msra.mxu0 %v1381
  %1383 = vmatprep.subr.mxu0 0.0
  %v1384 = vand.u32 %v12, 4294901760
  %1385 = vmatpush1.msra.mxu0 %v1384
  %1386 = vmatprep.subr.mxu0 0.0
  %1387 = vmatpush2.msra.mxu0 0.0
  %1388 = vmatprep.subr.mxu0 0.0
  %1389 = vmatpush2.msra.mxu0 0.0
  %1390 = vmatprep.subr.mxu0 0.0
  %1391 = vmatpush2.msra.mxu0 0.0
  %1392 = vmatprep.subr.mxu0 0.0
  %1393 = vmatpush2.msra.mxu0 0.0
  %1394 = vmatprep.subr.mxu0 0.0
  %1395 = vmatpush2.msra.mxu0 0.0
  %1396 = vmatprep.subr.mxu0 0.0
  %1397 = vmatpush2.msra.mxu0 0.0
  %1398 = vmatprep.subr.mxu0 0.0
  %1399 = vmatpush2.msra.mxu0 0.0
  %1400 = vmatprep.subr.mxu0 0.0
  %1401 = vmatpush2.msra.mxu0 0.0
  %1402 = vmatprep.subr.mxu0 0.0
  %1403 = vmatpush2.msra.mxu0 0.0
  %1404 = vmatprep.subr.mxu0 0.0
  %1405 = vmatpush2.msra.mxu0 0.0
  %1406 = vmatprep.subr.mxu0 0.0
  %1407 = vmatpush2.msra.mxu0 0.0
  %1408 = vmatprep.subr.mxu0 0.0
  %1409 = vmatpush2.msra.mxu0 0.0
  %1410 = vmatprep.subr.mxu0 0.0
  %1411 = vmatpush2.msra.mxu0 0.0
  %1412 = vmatprep.subr.mxu0 0.0
  %1413 = vmatpush2.msra.mxu0 0.0
  %1414 = vmatprep.subr.mxu0 0.0
  %1415 = vmatpush2.msra.mxu0 0.0
  %1416 = vmatprep.subr.mxu0 0.0
  %1417 = vmatpush2.msra.mxu0 0.0
  %1418 = vmatprep.mubr.f32.mxu0 0.0
  %v1419 = vand.u32 %v1337, 4294901760
  %v1420 = vsub.f32 %v1337, %v1419
  %v1421 = vand.u32 %v1420, 4294901760
  %v1422 = vsub.f32 %v1420, %v1421
  %v1423 = vand.u32 %v1422, 4294901760
  %1424 = vmatmul.mubr.f32.gmra.mxu0 %v1423
  %v1425 = vpop.f32.mrf.mxu0
  %v1426 = vadd.f32 0.0, %v1425
  %v1427 = vpop.f32.mrf.mxu0
  %1428 = vdwg.mxu0
  %1429 = vmatprep.subr.mxu0 0.0
  %v1430 = vand.u32 %v27, 4294901760
  %v1431 = vsub.f32 %v27, %v1430
  %v1432 = vand.u32 %v1431, 4294901760
  %v1433 = vsub.f32 %v1431, %v1432
  %v1434 = vand.u32 %v1433, 4294901760
  %1435 = vmatpush1.msra.mxu0 %v1434
  %1436 = vmatprep.subr.mxu0 0.0
  %v1437 = vand.u32 %v26, 4294901760
  %v1438 = vsub.f32 %v26, %v1437
  %v1439 = vand.u32 %v1438, 4294901760
  %v1440 = vsub.f32 %v1438, %v1439
  %v1441 = vand.u32 %v1440, 4294901760
  %1442 = vmatpush1.msra.mxu0 %v1441
  %1443 = vmatprep.subr.mxu0 0.0
  %v1444 = vand.u32 %v25, 4294901760
  %v1445 = vsub.f32 %v25, %v1444
  %v1446 = vand.u32 %v1445, 4294901760
  %v1447 = vsub.f32 %v1445, %v1446
  %v1448 = vand.u32 %v1447, 4294901760
  %1449 = vmatpush1.msra.mxu0 %v1448
  %1450 = vmatprep.subr.mxu0 0.0
  %v1451 = vand.u32 %v24, 4294901760
  %v1452 = vsub.f32 %v24, %v1451
  %v1453 = vand.u32 %v1452, 4294901760
  %v1454 = vsub.f32 %v1452, %v1453
  %v1455 = vand.u32 %v1454, 4294901760
  %1456 = vmatpush1.msra.mxu0 %v1455
  %1457 = vmatprep.subr.mxu0 0.0
  %v1458 = vand.u32 %v23, 4294901760
  %v1459 = vsub.f32 %v23, %v1458
  %v1460 = vand.u32 %v1459, 4294901760
  %v1461 = vsub.f32 %v1459, %v1460
  %v1462 = vand.u32 %v1461, 4294901760
  %1463 = vmatpush1.msra.mxu0 %v1462
  %1464 = vmatprep.subr.mxu0 0.0
  %v1465 = vand.u32 %v22, 4294901760
  %v1466 = vsub.f32 %v22, %v1465
  %v1467 = vand.u32 %v1466, 4294901760
  %v1468 = vsub.f32 %v1466, %v1467
  %v1469 = vand.u32 %v1468, 4294901760
  %1470 = vmatpush1.msra.mxu0 %v1469
  %1471 = vmatprep.subr.mxu0 0.0
  %v1472 = vand.u32 %v21, 4294901760
  %v1473 = vsub.f32 %v21, %v1472
  %v1474 = vand.u32 %v1473, 4294901760
  %v1475 = vsub.f32 %v1473, %v1474
  %v1476 = vand.u32 %v1475, 4294901760
  %1477 = vmatpush1.msra.mxu0 %v1476
  %1478 = vmatprep.subr.mxu0 0.0
  %v1479 = vand.u32 %v20, 4294901760
  %v1480 = vsub.f32 %v20, %v1479
  %v1481 = vand.u32 %v1480, 4294901760
  %v1482 = vsub.f32 %v1480, %v1481
  %v1483 = vand.u32 %v1482, 4294901760
  %1484 = vmatpush1.msra.mxu0 %v1483
  %1485 = vmatprep.subr.mxu0 0.0
  %v1486 = vand.u32 %v19, 4294901760
  %v1487 = vsub.f32 %v19, %v1486
  %v1488 = vand.u32 %v1487, 4294901760
  %v1489 = vsub.f32 %v1487, %v1488
  %v1490 = vand.u32 %v1489, 4294901760
  %1491 = vmatpush1.msra.mxu0 %v1490
  %1492 = vmatprep.subr.mxu0 0.0
  %v1493 = vand.u32 %v18, 4294901760
  %v1494 = vsub.f32 %v18, %v1493
  %v1495 = vand.u32 %v1494, 4294901760
  %v1496 = vsub.f32 %v1494, %v1495
  %v1497 = vand.u32 %v1496, 4294901760
  %1498 = vmatpush1.msra.mxu0 %v1497
  %1499 = vmatprep.subr.mxu0 0.0
  %v1500 = vand.u32 %v17, 4294901760
  %v1501 = vsub.f32 %v17, %v1500
  %v1502 = vand.u32 %v1501, 4294901760
  %v1503 = vsub.f32 %v1501, %v1502
  %v1504 = vand.u32 %v1503, 4294901760
  %1505 = vmatpush1.msra.mxu0 %v1504
  %1506 = vmatprep.subr.mxu0 0.0
  %v1507 = vand.u32 %v16, 4294901760
  %v1508 = vsub.f32 %v16, %v1507
  %v1509 = vand.u32 %v1508, 4294901760
  %v1510 = vsub.f32 %v1508, %v1509
  %v1511 = vand.u32 %v1510, 4294901760
  %1512 = vmatpush1.msra.mxu0 %v1511
  %1513 = vmatprep.subr.mxu0 0.0
  %v1514 = vand.u32 %v15, 4294901760
  %v1515 = vsub.f32 %v15, %v1514
  %v1516 = vand.u32 %v1515, 4294901760
  %v1517 = vsub.f32 %v1515, %v1516
  %v1518 = vand.u32 %v1517, 4294901760
  %1519 = vmatpush1.msra.mxu0 %v1518
  %1520 = vmatprep.subr.mxu0 0.0
  %v1521 = vand.u32 %v14, 4294901760
  %v1522 = vsub.f32 %v14, %v1521
  %v1523 = vand.u32 %v1522, 4294901760
  %v1524 = vsub.f32 %v1522, %v1523
  %v1525 = vand.u32 %v1524, 4294901760
  %1526 = vmatpush1.msra.mxu0 %v1525
  %1527 = vmatprep.subr.mxu0 0.0
  %v1528 = vand.u32 %v13, 4294901760
  %v1529 = vsub.f32 %v13, %v1528
  %v1530 = vand.u32 %v1529, 4294901760
  %v1531 = vsub.f32 %v1529, %v1530
  %v1532 = vand.u32 %v1531, 4294901760
  %1533 = vmatpush1.msra.mxu0 %v1532
  %1534 = vmatprep.subr.mxu0 0.0
  %v1535 = vand.u32 %v12, 4294901760
  %v1536 = vsub.f32 %v12, %v1535
  %v1537 = vand.u32 %v1536, 4294901760
  %v1538 = vsub.f32 %v1536, %v1537
  %v1539 = vand.u32 %v1538, 4294901760
  %1540 = vmatpush1.msra.mxu0 %v1539
  %1541 = vmatprep.subr.mxu0 0.0
  %1542 = vmatpush2.msra.mxu0 0.0
  %1543 = vmatprep.subr.mxu0 0.0
  %1544 = vmatpush2.msra.mxu0 0.0
  %1545 = vmatprep.subr.mxu0 0.0
  %1546 = vmatpush2.msra.mxu0 0.0
  %1547 = vmatprep.subr.mxu0 0.0
  %1548 = vmatpush2.msra.mxu0 0.0
  %1549 = vmatprep.subr.mxu0 0.0
  %1550 = vmatpush2.msra.mxu0 0.0
  %1551 = vmatprep.subr.mxu0 0.0
  %1552 = vmatpush2.msra.mxu0 0.0
  %1553 = vmatprep.subr.mxu0 0.0
  %1554 = vmatpush2.msra.mxu0 0.0
  %1555 = vmatprep.subr.mxu0 0.0
  %1556 = vmatpush2.msra.mxu0 0.0
  %1557 = vmatprep.subr.mxu0 0.0
  %1558 = vmatpush2.msra.mxu0 0.0
  %1559 = vmatprep.subr.mxu0 0.0
  %1560 = vmatpush2.msra.mxu0 0.0
  %1561 = vmatprep.subr.mxu0 0.0
  %1562 = vmatpush2.msra.mxu0 0.0
  %1563 = vmatprep.subr.mxu0 0.0
  %1564 = vmatpush2.msra.mxu0 0.0
  %1565 = vmatprep.subr.mxu0 0.0
  %1566 = vmatpush2.msra.mxu0 0.0
  %1567 = vmatprep.subr.mxu0 0.0
  %1568 = vmatpush2.msra.mxu0 0.0
  %1569 = vmatprep.subr.mxu0 0.0
  %1570 = vmatpush2.msra.mxu0 0.0
  %1571 = vmatprep.subr.mxu0 0.0
  %1572 = vmatpush2.msra.mxu0 0.0
  %1573 = vmatprep.mubr.f32.mxu0 0.0
  %v1574 = vand.u32 %v1337, 4294901760
  %1575 = vmatmul.mubr.f32.gmra.mxu0 %v1574
  %v1576 = vpop.f32.mrf.mxu0
  %v1577 = vadd.f32 %v1426, %v1576
  %v1578 = vpop.f32.mrf.mxu0
  %1579 = vdwg.mxu0
  %1580 = vmatprep.subr.mxu0 0.0
  %v1581 = vand.u32 %v27, 4294901760
  %v1582 = vsub.f32 %v27, %v1581
  %1583 = vmatpush1.msra.mxu0 %v1582
  %1584 = vmatprep.subr.mxu0 0.0
  %v1585 = vand.u32 %v26, 4294901760
  %v1586 = vsub.f32 %v26, %v1585
  %1587 = vmatpush1.msra.mxu0 %v1586
  %1588 = vmatprep.subr.mxu0 0.0
  %v1589 = vand.u32 %v25, 4294901760
  %v1590 = vsub.f32 %v25, %v1589
  %1591 = vmatpush1.msra.mxu0 %v1590
  %1592 = vmatprep.subr.mxu0 0.0
  %v1593 = vand.u32 %v24, 4294901760
  %v1594 = vsub.f32 %v24, %v1593
  %1595 = vmatpush1.msra.mxu0 %v1594
  %1596 = vmatprep.subr.mxu0 0.0
  %v1597 = vand.u32 %v23, 4294901760
  %v1598 = vsub.f32 %v23, %v1597
  %1599 = vmatpush1.msra.mxu0 %v1598
  %1600 = vmatprep.subr.mxu0 0.0
  %v1601 = vand.u32 %v22, 4294901760
  %v1602 = vsub.f32 %v22, %v1601
  %1603 = vmatpush1.msra.mxu0 %v1602
  %1604 = vmatprep.subr.mxu0 0.0
  %v1605 = vand.u32 %v21, 4294901760
  %v1606 = vsub.f32 %v21, %v1605
  %1607 = vmatpush1.msra.mxu0 %v1606
  %1608 = vmatprep.subr.mxu0 0.0
  %v1609 = vand.u32 %v20, 4294901760
  %v1610 = vsub.f32 %v20, %v1609
  %1611 = vmatpush1.msra.mxu0 %v1610
  %1612 = vmatprep.subr.mxu0 0.0
  %v1613 = vand.u32 %v19, 4294901760
  %v1614 = vsub.f32 %v19, %v1613
  %1615 = vmatpush1.msra.mxu0 %v1614
  %1616 = vmatprep.subr.mxu0 0.0
  %v1617 = vand.u32 %v18, 4294901760
  %v1618 = vsub.f32 %v18, %v1617
  %1619 = vmatpush1.msra.mxu0 %v1618
  %1620 = vmatprep.subr.mxu0 0.0
  %v1621 = vand.u32 %v17, 4294901760
  %v1622 = vsub.f32 %v17, %v1621
  %1623 = vmatpush1.msra.mxu0 %v1622
  %1624 = vmatprep.subr.mxu0 0.0
  %v1625 = vand.u32 %v16, 4294901760
  %v1626 = vsub.f32 %v16, %v1625
  %1627 = vmatpush1.msra.mxu0 %v1626
  %1628 = vmatprep.subr.mxu0 0.0
  %v1629 = vand.u32 %v15, 4294901760
  %v1630 = vsub.f32 %v15, %v1629
  %1631 = vmatpush1.msra.mxu0 %v1630
  %1632 = vmatprep.subr.mxu0 0.0
  %v1633 = vand.u32 %v14, 4294901760
  %v1634 = vsub.f32 %v14, %v1633
  %1635 = vmatpush1.msra.mxu0 %v1634
  %1636 = vmatprep.subr.mxu0 0.0
  %v1637 = vand.u32 %v13, 4294901760
  %v1638 = vsub.f32 %v13, %v1637
  %1639 = vmatpush1.msra.mxu0 %v1638
  %1640 = vmatprep.subr.mxu0 0.0
  %v1641 = vand.u32 %v12, 4294901760
  %v1642 = vsub.f32 %v12, %v1641
  %1643 = vmatpush1.msra.mxu0 %v1642
  %1644 = vmatprep.subr.mxu0 0.0
  %1645 = vmatpush2.msra.mxu0 0.0
  %1646 = vmatprep.subr.mxu0 0.0
  %1647 = vmatpush2.msra.mxu0 0.0
  %1648 = vmatprep.subr.mxu0 0.0
  %1649 = vmatpush2.msra.mxu0 0.0
  %1650 = vmatprep.subr.mxu0 0.0
  %1651 = vmatpush2.msra.mxu0 0.0
  %1652 = vmatprep.subr.mxu0 0.0
  %1653 = vmatpush2.msra.mxu0 0.0
  %1654 = vmatprep.subr.mxu0 0.0
  %1655 = vmatpush2.msra.mxu0 0.0
  %1656 = vmatprep.subr.mxu0 0.0
  %1657 = vmatpush2.msra.mxu0 0.0
  %1658 = vmatprep.subr.mxu0 0.0
  %1659 = vmatpush2.msra.mxu0 0.0
  %1660 = vmatprep.subr.mxu0 0.0
  %1661 = vmatpush2.msra.mxu0 0.0
  %1662 = vmatprep.subr.mxu0 0.0
  %1663 = vmatpush2.msra.mxu0 0.0
  %1664 = vmatprep.subr.mxu0 0.0
  %1665 = vmatpush2.msra.mxu0 0.0
  %1666 = vmatprep.subr.mxu0 0.0
  %1667 = vmatpush2.msra.mxu0 0.0
  %1668 = vmatprep.subr.mxu0 0.0
  %1669 = vmatpush2.msra.mxu0 0.0
  %1670 = vmatprep.subr.mxu0 0.0
  %1671 = vmatpush2.msra.mxu0 0.0
  %1672 = vmatprep.subr.mxu0 0.0
  %1673 = vmatpush2.msra.mxu0 0.0
  %1674 = vmatprep.subr.mxu0 0.0
  %1675 = vmatpush2.msra.mxu0 0.0
  %1676 = vmatprep.mubr.f32.mxu0 0.0
  %v1677 = vand.u32 %v1337, 4294901760
  %v1678 = vsub.f32 %v1337, %v1677
  %1679 = vmatmul.mubr.f32.gmra.mxu0 %v1678
  %v1680 = vpop.f32.mrf.mxu0
  %v1681 = vadd.f32 %v1577, %v1680
  %v1682 = vpop.f32.mrf.mxu0
  %1683 = vdwg.mxu0
  %1684 = vmatprep.subr.mxu0 0.0
  %v1685 = vand.u32 %v27, 4294901760
  %1686 = vmatpush1.msra.mxu0 %v1685
  %1687 = vmatprep.subr.mxu0 0.0
  %v1688 = vand.u32 %v26, 4294901760
  %1689 = vmatpush1.msra.mxu0 %v1688
  %1690 = vmatprep.subr.mxu0 0.0
  %v1691 = vand.u32 %v25, 4294901760
  %1692 = vmatpush1.msra.mxu0 %v1691
  %1693 = vmatprep.subr.mxu0 0.0
  %v1694 = vand.u32 %v24, 4294901760
  %1695 = vmatpush1.msra.mxu0 %v1694
  %1696 = vmatprep.subr.mxu0 0.0
  %v1697 = vand.u32 %v23, 4294901760
  %1698 = vmatpush1.msra.mxu0 %v1697
  %1699 = vmatprep.subr.mxu0 0.0
  %v1700 = vand.u32 %v22, 4294901760
  %1701 = vmatpush1.msra.mxu0 %v1700
  %1702 = vmatprep.subr.mxu0 0.0
  %v1703 = vand.u32 %v21, 4294901760
  %1704 = vmatpush1.msra.mxu0 %v1703
  %1705 = vmatprep.subr.mxu0 0.0
  %v1706 = vand.u32 %v20, 4294901760
  %1707 = vmatpush1.msra.mxu0 %v1706
  %1708 = vmatprep.subr.mxu0 0.0
  %v1709 = vand.u32 %v19, 4294901760
  %1710 = vmatpush1.msra.mxu0 %v1709
  %1711 = vmatprep.subr.mxu0 0.0
  %v1712 = vand.u32 %v18, 4294901760
  %1713 = vmatpush1.msra.mxu0 %v1712
  %1714 = vmatprep.subr.mxu0 0.0
  %v1715 = vand.u32 %v17, 4294901760
  %1716 = vmatpush1.msra.mxu0 %v1715
  %1717 = vmatprep.subr.mxu0 0.0
  %v1718 = vand.u32 %v16, 4294901760
  %1719 = vmatpush1.msra.mxu0 %v1718
  %1720 = vmatprep.subr.mxu0 0.0
  %v1721 = vand.u32 %v15, 4294901760
  %1722 = vmatpush1.msra.mxu0 %v1721
  %1723 = vmatprep.subr.mxu0 0.0
  %v1724 = vand.u32 %v14, 4294901760
  %1725 = vmatpush1.msra.mxu0 %v1724
  %1726 = vmatprep.subr.mxu0 0.0
  %v1727 = vand.u32 %v13, 4294901760
  %1728 = vmatpush1.msra.mxu0 %v1727
  %1729 = vmatprep.subr.mxu0 0.0
  %v1730 = vand.u32 %v12, 4294901760
  %1731 = vmatpush1.msra.mxu0 %v1730
  %1732 = vmatprep.subr.mxu0 0.0
  %1733 = vmatpush2.msra.mxu0 0.0
  %1734 = vmatprep.subr.mxu0 0.0
  %1735 = vmatpush2.msra.mxu0 0.0
  %1736 = vmatprep.subr.mxu0 0.0
  %1737 = vmatpush2.msra.mxu0 0.0
  %1738 = vmatprep.subr.mxu0 0.0
  %1739 = vmatpush2.msra.mxu0 0.0
  %1740 = vmatprep.subr.mxu0 0.0
  %1741 = vmatpush2.msra.mxu0 0.0
  %1742 = vmatprep.subr.mxu0 0.0
  %1743 = vmatpush2.msra.mxu0 0.0
  %1744 = vmatprep.subr.mxu0 0.0
  %1745 = vmatpush2.msra.mxu0 0.0
  %1746 = vmatprep.subr.mxu0 0.0
  %1747 = vmatpush2.msra.mxu0 0.0
  %1748 = vmatprep.subr.mxu0 0.0
  %1749 = vmatpush2.msra.mxu0 0.0
  %1750 = vmatprep.subr.mxu0 0.0
  %1751 = vmatpush2.msra.mxu0 0.0
  %1752 = vmatprep.subr.mxu0 0.0
  %1753 = vmatpush2.msra.mxu0 0.0
  %1754 = vmatprep.subr.mxu0 0.0
  %1755 = vmatpush2.msra.mxu0 0.0
  %1756 = vmatprep.subr.mxu0 0.0
  %1757 = vmatpush2.msra.mxu0 0.0
  %1758 = vmatprep.subr.mxu0 0.0
  %1759 = vmatpush2.msra.mxu0 0.0
  %1760 = vmatprep.subr.mxu0 0.0
  %1761 = vmatpush2.msra.mxu0 0.0
  %1762 = vmatprep.subr.mxu0 0.0
  %1763 = vmatpush2.msra.mxu0 0.0
  %1764 = vmatprep.mubr.f32.mxu0 0.0
  %v1765 = vand.u32 %v1337, 4294901760
  %v1766 = vsub.f32 %v1337, %v1765
  %v1767 = vand.u32 %v1766, 4294901760
  %1768 = vmatmul.mubr.f32.gmra.mxu0 %v1767
  %v1769 = vpop.f32.mrf.mxu0
  %v1770 = vadd.f32 %v1681, %v1769
  %v1771 = vpop.f32.mrf.mxu0
  %1772 = vdwg.mxu0
  %1773 = vmatprep.subr.mxu0 0.0
  %v1774 = vand.u32 %v27, 4294901760
  %v1775 = vsub.f32 %v27, %v1774
  %v1776 = vand.u32 %v1775, 4294901760
  %1777 = vmatpush1.msra.mxu0 %v1776
  %1778 = vmatprep.subr.mxu0 0.0
  %v1779 = vand.u32 %v26, 4294901760
  %v1780 = vsub.f32 %v26, %v1779
  %v1781 = vand.u32 %v1780, 4294901760
  %1782 = vmatpush1.msra.mxu0 %v1781
  %1783 = vmatprep.subr.mxu0 0.0
  %v1784 = vand.u32 %v25, 4294901760
  %v1785 = vsub.f32 %v25, %v1784
  %v1786 = vand.u32 %v1785, 4294901760
  %1787 = vmatpush1.msra.mxu0 %v1786
  %1788 = vmatprep.subr.mxu0 0.0
  %v1789 = vand.u32 %v24, 4294901760
  %v1790 = vsub.f32 %v24, %v1789
  %v1791 = vand.u32 %v1790, 4294901760
  %1792 = vmatpush1.msra.mxu0 %v1791
  %1793 = vmatprep.subr.mxu0 0.0
  %v1794 = vand.u32 %v23, 4294901760
  %v1795 = vsub.f32 %v23, %v1794
  %v1796 = vand.u32 %v1795, 4294901760
  %1797 = vmatpush1.msra.mxu0 %v1796
  %1798 = vmatprep.subr.mxu0 0.0
  %v1799 = vand.u32 %v22, 4294901760
  %v1800 = vsub.f32 %v22, %v1799
  %v1801 = vand.u32 %v1800, 4294901760
  %1802 = vmatpush1.msra.mxu0 %v1801
  %1803 = vmatprep.subr.mxu0 0.0
  %v1804 = vand.u32 %v21, 4294901760
  %v1805 = vsub.f32 %v21, %v1804
  %v1806 = vand.u32 %v1805, 4294901760
  %1807 = vmatpush1.msra.mxu0 %v1806
  %1808 = vmatprep.subr.mxu0 0.0
  %v1809 = vand.u32 %v20, 4294901760
  %v1810 = vsub.f32 %v20, %v1809
  %v1811 = vand.u32 %v1810, 4294901760
  %1812 = vmatpush1.msra.mxu0 %v1811
  %1813 = vmatprep.subr.mxu0 0.0
  %v1814 = vand.u32 %v19, 4294901760
  %v1815 = vsub.f32 %v19, %v1814
  %v1816 = vand.u32 %v1815, 4294901760
  %1817 = vmatpush1.msra.mxu0 %v1816
  %1818 = vmatprep.subr.mxu0 0.0
  %v1819 = vand.u32 %v18, 4294901760
  %v1820 = vsub.f32 %v18, %v1819
  %v1821 = vand.u32 %v1820, 4294901760
  %1822 = vmatpush1.msra.mxu0 %v1821
  %1823 = vmatprep.subr.mxu0 0.0
  %v1824 = vand.u32 %v17, 4294901760
  %v1825 = vsub.f32 %v17, %v1824
  %v1826 = vand.u32 %v1825, 4294901760
  %1827 = vmatpush1.msra.mxu0 %v1826
  %1828 = vmatprep.subr.mxu0 0.0
  %v1829 = vand.u32 %v16, 4294901760
  %v1830 = vsub.f32 %v16, %v1829
  %v1831 = vand.u32 %v1830, 4294901760
  %1832 = vmatpush1.msra.mxu0 %v1831
  %1833 = vmatprep.subr.mxu0 0.0
  %v1834 = vand.u32 %v15, 4294901760
  %v1835 = vsub.f32 %v15, %v1834
  %v1836 = vand.u32 %v1835, 4294901760
  %1837 = vmatpush1.msra.mxu0 %v1836
  %1838 = vmatprep.subr.mxu0 0.0
  %v1839 = vand.u32 %v14, 4294901760
  %v1840 = vsub.f32 %v14, %v1839
  %v1841 = vand.u32 %v1840, 4294901760
  %1842 = vmatpush1.msra.mxu0 %v1841
  %1843 = vmatprep.subr.mxu0 0.0
  %v1844 = vand.u32 %v13, 4294901760
  %v1845 = vsub.f32 %v13, %v1844
  %v1846 = vand.u32 %v1845, 4294901760
  %1847 = vmatpush1.msra.mxu0 %v1846
  %1848 = vmatprep.subr.mxu0 0.0
  %v1849 = vand.u32 %v12, 4294901760
  %v1850 = vsub.f32 %v12, %v1849
  %v1851 = vand.u32 %v1850, 4294901760
  %1852 = vmatpush1.msra.mxu0 %v1851
  %1853 = vmatprep.subr.mxu0 0.0
  %1854 = vmatpush2.msra.mxu0 0.0
  %1855 = vmatprep.subr.mxu0 0.0
  %1856 = vmatpush2.msra.mxu0 0.0
  %1857 = vmatprep.subr.mxu0 0.0
  %1858 = vmatpush2.msra.mxu0 0.0
  %1859 = vmatprep.subr.mxu0 0.0
  %1860 = vmatpush2.msra.mxu0 0.0
  %1861 = vmatprep.subr.mxu0 0.0
  %1862 = vmatpush2.msra.mxu0 0.0
  %1863 = vmatprep.subr.mxu0 0.0
  %1864 = vmatpush2.msra.mxu0 0.0
  %1865 = vmatprep.subr.mxu0 0.0
  %1866 = vmatpush2.msra.mxu0 0.0
  %1867 = vmatprep.subr.mxu0 0.0
  %1868 = vmatpush2.msra.mxu0 0.0
  %1869 = vmatprep.subr.mxu0 0.0
  %1870 = vmatpush2.msra.mxu0 0.0
  %1871 = vmatprep.subr.mxu0 0.0
  %1872 = vmatpush2.msra.mxu0 0.0
  %1873 = vmatprep.subr.mxu0 0.0
  %1874 = vmatpush2.msra.mxu0 0.0
  %1875 = vmatprep.subr.mxu0 0.0
  %1876 = vmatpush2.msra.mxu0 0.0
  %1877 = vmatprep.subr.mxu0 0.0
  %1878 = vmatpush2.msra.mxu0 0.0
  %1879 = vmatprep.subr.mxu0 0.0
  %1880 = vmatpush2.msra.mxu0 0.0
  %1881 = vmatprep.subr.mxu0 0.0
  %1882 = vmatpush2.msra.mxu0 0.0
  %1883 = vmatprep.subr.mxu0 0.0
  %1884 = vmatpush2.msra.mxu0 0.0
  %1885 = vmatprep.mubr.f32.mxu0 0.0
  %v1886 = vand.u32 %v1337, 4294901760
  %1887 = vmatmul.mubr.f32.gmra.mxu0 %v1886
  %v1888 = vpop.f32.mrf.mxu0
  %v1889 = vadd.f32 %v1770, %v1888
  %v1890 = vpop.f32.mrf.mxu0
  %1891 = vdwg.mxu0
  %1892 = vmatprep.subr.mxu0 0.0
  %v1893 = vand.u32 %v27, 4294901760
  %1894 = vmatpush1.msra.mxu0 %v1893
  %1895 = vmatprep.subr.mxu0 0.0
  %v1896 = vand.u32 %v26, 4294901760
  %1897 = vmatpush1.msra.mxu0 %v1896
  %1898 = vmatprep.subr.mxu0 0.0
  %v1899 = vand.u32 %v25, 4294901760
  %1900 = vmatpush1.msra.mxu0 %v1899
  %1901 = vmatprep.subr.mxu0 0.0
  %v1902 = vand.u32 %v24, 4294901760
  %1903 = vmatpush1.msra.mxu0 %v1902
  %1904 = vmatprep.subr.mxu0 0.0
  %v1905 = vand.u32 %v23, 4294901760
  %1906 = vmatpush1.msra.mxu0 %v1905
  %1907 = vmatprep.subr.mxu0 0.0
  %v1908 = vand.u32 %v22, 4294901760
  %1909 = vmatpush1.msra.mxu0 %v1908
  %1910 = vmatprep.subr.mxu0 0.0
  %v1911 = vand.u32 %v21, 4294901760
  %1912 = vmatpush1.msra.mxu0 %v1911
  %1913 = vmatprep.subr.mxu0 0.0
  %v1914 = vand.u32 %v20, 4294901760
  %1915 = vmatpush1.msra.mxu0 %v1914
  %1916 = vmatprep.subr.mxu0 0.0
  %v1917 = vand.u32 %v19, 4294901760
  %1918 = vmatpush1.msra.mxu0 %v1917
  %1919 = vmatprep.subr.mxu0 0.0
  %v1920 = vand.u32 %v18, 4294901760
  %1921 = vmatpush1.msra.mxu0 %v1920
  %1922 = vmatprep.subr.mxu0 0.0
  %v1923 = vand.u32 %v17, 4294901760
  %1924 = vmatpush1.msra.mxu0 %v1923
  %1925 = vmatprep.subr.mxu0 0.0
  %v1926 = vand.u32 %v16, 4294901760
  %1927 = vmatpush1.msra.mxu0 %v1926
  %1928 = vmatprep.subr.mxu0 0.0
  %v1929 = vand.u32 %v15, 4294901760
  %1930 = vmatpush1.msra.mxu0 %v1929
  %1931 = vmatprep.subr.mxu0 0.0
  %v1932 = vand.u32 %v14, 4294901760
  %1933 = vmatpush1.msra.mxu0 %v1932
  %1934 = vmatprep.subr.mxu0 0.0
  %v1935 = vand.u32 %v13, 4294901760
  %1936 = vmatpush1.msra.mxu0 %v1935
  %1937 = vmatprep.subr.mxu0 0.0
  %v1938 = vand.u32 %v12, 4294901760
  %1939 = vmatpush1.msra.mxu0 %v1938
  %1940 = vmatprep.subr.mxu0 0.0
  %1941 = vmatpush2.msra.mxu0 0.0
  %1942 = vmatprep.subr.mxu0 0.0
  %1943 = vmatpush2.msra.mxu0 0.0
  %1944 = vmatprep.subr.mxu0 0.0
  %1945 = vmatpush2.msra.mxu0 0.0
  %1946 = vmatprep.subr.mxu0 0.0
  %1947 = vmatpush2.msra.mxu0 0.0
  %1948 = vmatprep.subr.mxu0 0.0
  %1949 = vmatpush2.msra.mxu0 0.0
  %1950 = vmatprep.subr.mxu0 0.0
  %1951 = vmatpush2.msra.mxu0 0.0
  %1952 = vmatprep.subr.mxu0 0.0
  %1953 = vmatpush2.msra.mxu0 0.0
  %1954 = vmatprep.subr.mxu0 0.0
  %1955 = vmatpush2.msra.mxu0 0.0
  %1956 = vmatprep.subr.mxu0 0.0
  %1957 = vmatpush2.msra.mxu0 0.0
  %1958 = vmatprep.subr.mxu0 0.0
  %1959 = vmatpush2.msra.mxu0 0.0
  %1960 = vmatprep.subr.mxu0 0.0
  %1961 = vmatpush2.msra.mxu0 0.0
  %1962 = vmatprep.subr.mxu0 0.0
  %1963 = vmatpush2.msra.mxu0 0.0
  %1964 = vmatprep.subr.mxu0 0.0
  %1965 = vmatpush2.msra.mxu0 0.0
  %1966 = vmatprep.subr.mxu0 0.0
  %1967 = vmatpush2.msra.mxu0 0.0
  %1968 = vmatprep.subr.mxu0 0.0
  %1969 = vmatpush2.msra.mxu0 0.0
  %1970 = vmatprep.subr.mxu0 0.0
  %1971 = vmatpush2.msra.mxu0 0.0
  %1972 = vmatprep.mubr.f32.mxu0 0.0
  %v1973 = vand.u32 %v1337, 4294901760
  %1974 = vmatmul.mubr.f32.gmra.mxu0 %v1973
  %v1975 = vpop.f32.mrf.mxu0
  %v1976 = vadd.f32 %v1889, %v1975
  %v1977 = vpop.f32.mrf.mxu0
  %1978 = vdwg.mxu0
  %1980 = vrot.lane.b32.xlu0 %v1976, 64
  %v1981 = vpop.permute.xlu0 %1980
  %vm1983 = vcmask 785920
  %1984 = vst.msk [vmem:[%s2] sm:$0xff] %vm1983, %v1981
  %1985 = vset.pattern.permute.xlu0 3
  %1986 = vperm.xlu0 %1985, %v11
  %v1987 = vpop.permute.xlu0 %1986
  %vm1988 = vcmp.eq.s32.totalorder %v29, %v1987
  %v1989 = vsel %vm1988, 1, 0
  %v1990 = vcvt.s32.f32 %v1989
  %1991 = vmatprep.subr.mxu0 0.0
  %v1992 = vand.u32 %v27, 4294901760
  %1993 = vmatpush1.msra.mxu0 %v1992
  %1994 = vmatprep.subr.mxu0 0.0
  %v1995 = vand.u32 %v26, 4294901760
  %1996 = vmatpush1.msra.mxu0 %v1995
  %1997 = vmatprep.subr.mxu0 0.0
  %v1998 = vand.u32 %v25, 4294901760
  %1999 = vmatpush1.msra.mxu0 %v1998
  %2000 = vmatprep.subr.mxu0 0.0
  %v2001 = vand.u32 %v24, 4294901760
  %2002 = vmatpush1.msra.mxu0 %v2001
  %2003 = vmatprep.subr.mxu0 0.0
  %v2004 = vand.u32 %v23, 4294901760
  %2005 = vmatpush1.msra.mxu0 %v2004
  %2006 = vmatprep.subr.mxu0 0.0
  %v2007 = vand.u32 %v22, 4294901760
  %2008 = vmatpush1.msra.mxu0 %v2007
  %2009 = vmatprep.subr.mxu0 0.0
  %v2010 = vand.u32 %v21, 4294901760
  %2011 = vmatpush1.msra.mxu0 %v2010
  %2012 = vmatprep.subr.mxu0 0.0
  %v2013 = vand.u32 %v20, 4294901760
  %2014 = vmatpush1.msra.mxu0 %v2013
  %2015 = vmatprep.subr.mxu0 0.0
  %v2016 = vand.u32 %v19, 4294901760
  %2017 = vmatpush1.msra.mxu0 %v2016
  %2018 = vmatprep.subr.mxu0 0.0
  %v2019 = vand.u32 %v18, 4294901760
  %2020 = vmatpush1.msra.mxu0 %v2019
  %2021 = vmatprep.subr.mxu0 0.0
  %v2022 = vand.u32 %v17, 4294901760
  %2023 = vmatpush1.msra.mxu0 %v2022
  %2024 = vmatprep.subr.mxu0 0.0
  %v2025 = vand.u32 %v16, 4294901760
  %2026 = vmatpush1.msra.mxu0 %v2025
  %2027 = vmatprep.subr.mxu0 0.0
  %v2028 = vand.u32 %v15, 4294901760
  %2029 = vmatpush1.msra.mxu0 %v2028
  %2030 = vmatprep.subr.mxu0 0.0
  %v2031 = vand.u32 %v14, 4294901760
  %2032 = vmatpush1.msra.mxu0 %v2031
  %2033 = vmatprep.subr.mxu0 0.0
  %v2034 = vand.u32 %v13, 4294901760
  %2035 = vmatpush1.msra.mxu0 %v2034
  %2036 = vmatprep.subr.mxu0 0.0
  %v2037 = vand.u32 %v12, 4294901760
  %2038 = vmatpush1.msra.mxu0 %v2037
  %2039 = vmatprep.subr.mxu0 0.0
  %2040 = vmatpush2.msra.mxu0 0.0
  %2041 = vmatprep.subr.mxu0 0.0
  %2042 = vmatpush2.msra.mxu0 0.0
  %2043 = vmatprep.subr.mxu0 0.0
  %2044 = vmatpush2.msra.mxu0 0.0
  %2045 = vmatprep.subr.mxu0 0.0
  %2046 = vmatpush2.msra.mxu0 0.0
  %2047 = vmatprep.subr.mxu0 0.0
  %2048 = vmatpush2.msra.mxu0 0.0
  %2049 = vmatprep.subr.mxu0 0.0
  %2050 = vmatpush2.msra.mxu0 0.0
  %2051 = vmatprep.subr.mxu0 0.0
  %2052 = vmatpush2.msra.mxu0 0.0
  %2053 = vmatprep.subr.mxu0 0.0
  %2054 = vmatpush2.msra.mxu0 0.0
  %2055 = vmatprep.subr.mxu0 0.0
  %2056 = vmatpush2.msra.mxu0 0.0
  %2057 = vmatprep.subr.mxu0 0.0
  %2058 = vmatpush2.msra.mxu0 0.0
  %2059 = vmatprep.subr.mxu0 0.0
  %2060 = vmatpush2.msra.mxu0 0.0
  %2061 = vmatprep.subr.mxu0 0.0
  %2062 = vmatpush2.msra.mxu0 0.0
  %2063 = vmatprep.subr.mxu0 0.0
  %2064 = vmatpush2.msra.mxu0 0.0
  %2065 = vmatprep.subr.mxu0 0.0
  %2066 = vmatpush2.msra.mxu0 0.0
  %2067 = vmatprep.subr.mxu0 0.0
  %2068 = vmatpush2.msra.mxu0 0.0
  %2069 = vmatprep.subr.mxu0 0.0
  %2070 = vmatpush2.msra.mxu0 0.0
  %2071 = vmatprep.mubr.f32.mxu0 0.0
  %v2072 = vand.u32 %v1990, 4294901760
  %v2073 = vsub.f32 %v1990, %v2072
  %v2074 = vand.u32 %v2073, 4294901760
  %v2075 = vsub.f32 %v2073, %v2074
  %v2076 = vand.u32 %v2075, 4294901760
  %2077 = vmatmul.mubr.f32.gmra.mxu0 %v2076
  %v2078 = vpop.f32.mrf.mxu0
  %v2079 = vadd.f32 0.0, %v2078
  %v2080 = vpop.f32.mrf.mxu0
  %2081 = vdwg.mxu0
  %2082 = vmatprep.subr.mxu0 0.0
  %v2083 = vand.u32 %v27, 4294901760
  %v2084 = vsub.f32 %v27, %v2083
  %v2085 = vand.u32 %v2084, 4294901760
  %v2086 = vsub.f32 %v2084, %v2085
  %v2087 = vand.u32 %v2086, 4294901760
  %2088 = vmatpush1.msra.mxu0 %v2087
  %2089 = vmatprep.subr.mxu0 0.0
  %v2090 = vand.u32 %v26, 4294901760
  %v2091 = vsub.f32 %v26, %v2090
  %v2092 = vand.u32 %v2091, 4294901760
  %v2093 = vsub.f32 %v2091, %v2092
  %v2094 = vand.u32 %v2093, 4294901760
  %2095 = vmatpush1.msra.mxu0 %v2094
  %2096 = vmatprep.subr.mxu0 0.0
  %v2097 = vand.u32 %v25, 4294901760
  %v2098 = vsub.f32 %v25, %v2097
  %v2099 = vand.u32 %v2098, 4294901760
  %v2100 = vsub.f32 %v2098, %v2099
  %v2101 = vand.u32 %v2100, 4294901760
  %2102 = vmatpush1.msra.mxu0 %v2101
  %2103 = vmatprep.subr.mxu0 0.0
  %v2104 = vand.u32 %v24, 4294901760
  %v2105 = vsub.f32 %v24, %v2104
  %v2106 = vand.u32 %v2105, 4294901760
  %v2107 = vsub.f32 %v2105, %v2106
  %v2108 = vand.u32 %v2107, 4294901760
  %2109 = vmatpush1.msra.mxu0 %v2108
  %2110 = vmatprep.subr.mxu0 0.0
  %v2111 = vand.u32 %v23, 4294901760
  %v2112 = vsub.f32 %v23, %v2111
  %v2113 = vand.u32 %v2112, 4294901760
  %v2114 = vsub.f32 %v2112, %v2113
  %v2115 = vand.u32 %v2114, 4294901760
  %2116 = vmatpush1.msra.mxu0 %v2115
  %2117 = vmatprep.subr.mxu0 0.0
  %v2118 = vand.u32 %v22, 4294901760
  %v2119 = vsub.f32 %v22, %v2118
  %v2120 = vand.u32 %v2119, 4294901760
  %v2121 = vsub.f32 %v2119, %v2120
  %v2122 = vand.u32 %v2121, 4294901760
  %2123 = vmatpush1.msra.mxu0 %v2122
  %2124 = vmatprep.subr.mxu0 0.0
  %v2125 = vand.u32 %v21, 4294901760
  %v2126 = vsub.f32 %v21, %v2125
  %v2127 = vand.u32 %v2126, 4294901760
  %v2128 = vsub.f32 %v2126, %v2127
  %v2129 = vand.u32 %v2128, 4294901760
  %2130 = vmatpush1.msra.mxu0 %v2129
  %2131 = vmatprep.subr.mxu0 0.0
  %v2132 = vand.u32 %v20, 4294901760
  %v2133 = vsub.f32 %v20, %v2132
  %v2134 = vand.u32 %v2133, 4294901760
  %v2135 = vsub.f32 %v2133, %v2134
  %v2136 = vand.u32 %v2135, 4294901760
  %2137 = vmatpush1.msra.mxu0 %v2136
  %2138 = vmatprep.subr.mxu0 0.0
  %v2139 = vand.u32 %v19, 4294901760
  %v2140 = vsub.f32 %v19, %v2139
  %v2141 = vand.u32 %v2140, 4294901760
  %v2142 = vsub.f32 %v2140, %v2141
  %v2143 = vand.u32 %v2142, 4294901760
  %2144 = vmatpush1.msra.mxu0 %v2143
  %2145 = vmatprep.subr.mxu0 0.0
  %v2146 = vand.u32 %v18, 4294901760
  %v2147 = vsub.f32 %v18, %v2146
  %v2148 = vand.u32 %v2147, 4294901760
  %v2149 = vsub.f32 %v2147, %v2148
  %v2150 = vand.u32 %v2149, 4294901760
  %2151 = vmatpush1.msra.mxu0 %v2150
  %2152 = vmatprep.subr.mxu0 0.0
  %v2153 = vand.u32 %v17, 4294901760
  %v2154 = vsub.f32 %v17, %v2153
  %v2155 = vand.u32 %v2154, 4294901760
  %v2156 = vsub.f32 %v2154, %v2155
  %v2157 = vand.u32 %v2156, 4294901760
  %2158 = vmatpush1.msra.mxu0 %v2157
  %2159 = vmatprep.subr.mxu0 0.0
  %v2160 = vand.u32 %v16, 4294901760
  %v2161 = vsub.f32 %v16, %v2160
  %v2162 = vand.u32 %v2161, 4294901760
  %v2163 = vsub.f32 %v2161, %v2162
  %v2164 = vand.u32 %v2163, 4294901760
  %2165 = vmatpush1.msra.mxu0 %v2164
  %2166 = vmatprep.subr.mxu0 0.0
  %v2167 = vand.u32 %v15, 4294901760
  %v2168 = vsub.f32 %v15, %v2167
  %v2169 = vand.u32 %v2168, 4294901760
  %v2170 = vsub.f32 %v2168, %v2169
  %v2171 = vand.u32 %v2170, 4294901760
  %2172 = vmatpush1.msra.mxu0 %v2171
  %2173 = vmatprep.subr.mxu0 0.0
  %v2174 = vand.u32 %v14, 4294901760
  %v2175 = vsub.f32 %v14, %v2174
  %v2176 = vand.u32 %v2175, 4294901760
  %v2177 = vsub.f32 %v2175, %v2176
  %v2178 = vand.u32 %v2177, 4294901760
  %2179 = vmatpush1.msra.mxu0 %v2178
  %2180 = vmatprep.subr.mxu0 0.0
  %v2181 = vand.u32 %v13, 4294901760
  %v2182 = vsub.f32 %v13, %v2181
  %v2183 = vand.u32 %v2182, 4294901760
  %v2184 = vsub.f32 %v2182, %v2183
  %v2185 = vand.u32 %v2184, 4294901760
  %2186 = vmatpush1.msra.mxu0 %v2185
  %2187 = vmatprep.subr.mxu0 0.0
  %v2188 = vand.u32 %v12, 4294901760
  %v2189 = vsub.f32 %v12, %v2188
  %v2190 = vand.u32 %v2189, 4294901760
  %v2191 = vsub.f32 %v2189, %v2190
  %v2192 = vand.u32 %v2191, 4294901760
  %2193 = vmatpush1.msra.mxu0 %v2192
  %2194 = vmatprep.subr.mxu0 0.0
  %2195 = vmatpush2.msra.mxu0 0.0
  %2196 = vmatprep.subr.mxu0 0.0
  %2197 = vmatpush2.msra.mxu0 0.0
  %2198 = vmatprep.subr.mxu0 0.0
  %2199 = vmatpush2.msra.mxu0 0.0
  %2200 = vmatprep.subr.mxu0 0.0
  %2201 = vmatpush2.msra.mxu0 0.0
  %2202 = vmatprep.subr.mxu0 0.0
  %2203 = vmatpush2.msra.mxu0 0.0
  %2204 = vmatprep.subr.mxu0 0.0
  %2205 = vmatpush2.msra.mxu0 0.0
  %2206 = vmatprep.subr.mxu0 0.0
  %2207 = vmatpush2.msra.mxu0 0.0
  %2208 = vmatprep.subr.mxu0 0.0
  %2209 = vmatpush2.msra.mxu0 0.0
  %2210 = vmatprep.subr.mxu0 0.0
  %2211 = vmatpush2.msra.mxu0 0.0
  %2212 = vmatprep.subr.mxu0 0.0
  %2213 = vmatpush2.msra.mxu0 0.0
  %2214 = vmatprep.subr.mxu0 0.0
  %2215 = vmatpush2.msra.mxu0 0.0
  %2216 = vmatprep.subr.mxu0 0.0
  %2217 = vmatpush2.msra.mxu0 0.0
  %2218 = vmatprep.subr.mxu0 0.0
  %2219 = vmatpush2.msra.mxu0 0.0
  %2220 = vmatprep.subr.mxu0 0.0
  %2221 = vmatpush2.msra.mxu0 0.0
  %2222 = vmatprep.subr.mxu0 0.0
  %2223 = vmatpush2.msra.mxu0 0.0
  %2224 = vmatprep.subr.mxu0 0.0
  %2225 = vmatpush2.msra.mxu0 0.0
  %2226 = vmatprep.mubr.f32.mxu0 0.0
  %v2227 = vand.u32 %v1990, 4294901760
  %2228 = vmatmul.mubr.f32.gmra.mxu0 %v2227
  %v2229 = vpop.f32.mrf.mxu0
  %v2230 = vadd.f32 %v2079, %v2229
  %v2231 = vpop.f32.mrf.mxu0
  %2232 = vdwg.mxu0
  %2233 = vmatprep.subr.mxu0 0.0
  %v2234 = vand.u32 %v27, 4294901760
  %v2235 = vsub.f32 %v27, %v2234
  %2236 = vmatpush1.msra.mxu0 %v2235
  %2237 = vmatprep.subr.mxu0 0.0
  %v2238 = vand.u32 %v26, 4294901760
  %v2239 = vsub.f32 %v26, %v2238
  %2240 = vmatpush1.msra.mxu0 %v2239
  %2241 = vmatprep.subr.mxu0 0.0
  %v2242 = vand.u32 %v25, 4294901760
  %v2243 = vsub.f32 %v25, %v2242
  %2244 = vmatpush1.msra.mxu0 %v2243
  %2245 = vmatprep.subr.mxu0 0.0
  %v2246 = vand.u32 %v24, 4294901760
  %v2247 = vsub.f32 %v24, %v2246
  %2248 = vmatpush1.msra.mxu0 %v2247
  %2249 = vmatprep.subr.mxu0 0.0
  %v2250 = vand.u32 %v23, 4294901760
  %v2251 = vsub.f32 %v23, %v2250
  %2252 = vmatpush1.msra.mxu0 %v2251
  %2253 = vmatprep.subr.mxu0 0.0
  %v2254 = vand.u32 %v22, 4294901760
  %v2255 = vsub.f32 %v22, %v2254
  %2256 = vmatpush1.msra.mxu0 %v2255
  %2257 = vmatprep.subr.mxu0 0.0
  %v2258 = vand.u32 %v21, 4294901760
  %v2259 = vsub.f32 %v21, %v2258
  %2260 = vmatpush1.msra.mxu0 %v2259
  %2261 = vmatprep.subr.mxu0 0.0
  %v2262 = vand.u32 %v20, 4294901760
  %v2263 = vsub.f32 %v20, %v2262
  %2264 = vmatpush1.msra.mxu0 %v2263
  %2265 = vmatprep.subr.mxu0 0.0
  %v2266 = vand.u32 %v19, 4294901760
  %v2267 = vsub.f32 %v19, %v2266
  %2268 = vmatpush1.msra.mxu0 %v2267
  %2269 = vmatprep.subr.mxu0 0.0
  %v2270 = vand.u32 %v18, 4294901760
  %v2271 = vsub.f32 %v18, %v2270
  %2272 = vmatpush1.msra.mxu0 %v2271
  %2273 = vmatprep.subr.mxu0 0.0
  %v2274 = vand.u32 %v17, 4294901760
  %v2275 = vsub.f32 %v17, %v2274
  %2276 = vmatpush1.msra.mxu0 %v2275
  %2277 = vmatprep.subr.mxu0 0.0
  %v2278 = vand.u32 %v16, 4294901760
  %v2279 = vsub.f32 %v16, %v2278
  %2280 = vmatpush1.msra.mxu0 %v2279
  %2281 = vmatprep.subr.mxu0 0.0
  %v2282 = vand.u32 %v15, 4294901760
  %v2283 = vsub.f32 %v15, %v2282
  %2284 = vmatpush1.msra.mxu0 %v2283
  %2285 = vmatprep.subr.mxu0 0.0
  %v2286 = vand.u32 %v14, 4294901760
  %v2287 = vsub.f32 %v14, %v2286
  %2288 = vmatpush1.msra.mxu0 %v2287
  %2289 = vmatprep.subr.mxu0 0.0
  %v2290 = vand.u32 %v13, 4294901760
  %v2291 = vsub.f32 %v13, %v2290
  %2292 = vmatpush1.msra.mxu0 %v2291
  %2293 = vmatprep.subr.mxu0 0.0
  %v2294 = vand.u32 %v12, 4294901760
  %v2295 = vsub.f32 %v12, %v2294
  %2296 = vmatpush1.msra.mxu0 %v2295
  %2297 = vmatprep.subr.mxu0 0.0
  %2298 = vmatpush2.msra.mxu0 0.0
  %2299 = vmatprep.subr.mxu0 0.0
  %2300 = vmatpush2.msra.mxu0 0.0
  %2301 = vmatprep.subr.mxu0 0.0
  %2302 = vmatpush2.msra.mxu0 0.0
  %2303 = vmatprep.subr.mxu0 0.0
  %2304 = vmatpush2.msra.mxu0 0.0
  %2305 = vmatprep.subr.mxu0 0.0
  %2306 = vmatpush2.msra.mxu0 0.0
  %2307 = vmatprep.subr.mxu0 0.0
  %2308 = vmatpush2.msra.mxu0 0.0
  %2309 = vmatprep.subr.mxu0 0.0
  %2310 = vmatpush2.msra.mxu0 0.0
  %2311 = vmatprep.subr.mxu0 0.0
  %2312 = vmatpush2.msra.mxu0 0.0
  %2313 = vmatprep.subr.mxu0 0.0
  %2314 = vmatpush2.msra.mxu0 0.0
  %2315 = vmatprep.subr.mxu0 0.0
  %2316 = vmatpush2.msra.mxu0 0.0
  %2317 = vmatprep.subr.mxu0 0.0
  %2318 = vmatpush2.msra.mxu0 0.0
  %2319 = vmatprep.subr.mxu0 0.0
  %2320 = vmatpush2.msra.mxu0 0.0
  %2321 = vmatprep.subr.mxu0 0.0
  %2322 = vmatpush2.msra.mxu0 0.0
  %2323 = vmatprep.subr.mxu0 0.0
  %2324 = vmatpush2.msra.mxu0 0.0
  %2325 = vmatprep.subr.mxu0 0.0
  %2326 = vmatpush2.msra.mxu0 0.0
  %2327 = vmatprep.subr.mxu0 0.0
  %2328 = vmatpush2.msra.mxu0 0.0
  %2329 = vmatprep.mubr.f32.mxu0 0.0
  %v2330 = vand.u32 %v1990, 4294901760
  %v2331 = vsub.f32 %v1990, %v2330
  %2332 = vmatmul.mubr.f32.gmra.mxu0 %v2331
  %v2333 = vpop.f32.mrf.mxu0
  %v2334 = vadd.f32 %v2230, %v2333
  %v2335 = vpop.f32.mrf.mxu0
  %2336 = vdwg.mxu0
  %2337 = vmatprep.subr.mxu0 0.0
  %v2338 = vand.u32 %v27, 4294901760
  %2339 = vmatpush1.msra.mxu0 %v2338
  %2340 = vmatprep.subr.mxu0 0.0
  %v2341 = vand.u32 %v26, 4294901760
  %2342 = vmatpush1.msra.mxu0 %v2341
  %2343 = vmatprep.subr.mxu0 0.0
  %v2344 = vand.u32 %v25, 4294901760
  %2345 = vmatpush1.msra.mxu0 %v2344
  %2346 = vmatprep.subr.mxu0 0.0
  %v2347 = vand.u32 %v24, 4294901760
  %2348 = vmatpush1.msra.mxu0 %v2347
  %2349 = vmatprep.subr.mxu0 0.0
  %v2350 = vand.u32 %v23, 4294901760
  %2351 = vmatpush1.msra.mxu0 %v2350
  %2352 = vmatprep.subr.mxu0 0.0
  %v2353 = vand.u32 %v22, 4294901760
  %2354 = vmatpush1.msra.mxu0 %v2353
  %2355 = vmatprep.subr.mxu0 0.0
  %v2356 = vand.u32 %v21, 4294901760
  %2357 = vmatpush1.msra.mxu0 %v2356
  %2358 = vmatprep.subr.mxu0 0.0
  %v2359 = vand.u32 %v20, 4294901760
  %2360 = vmatpush1.msra.mxu0 %v2359
  %2361 = vmatprep.subr.mxu0 0.0
  %v2362 = vand.u32 %v19, 4294901760
  %2363 = vmatpush1.msra.mxu0 %v2362
  %2364 = vmatprep.subr.mxu0 0.0
  %v2365 = vand.u32 %v18, 4294901760
  %2366 = vmatpush1.msra.mxu0 %v2365
  %2367 = vmatprep.subr.mxu0 0.0
  %v2368 = vand.u32 %v17, 4294901760
  %2369 = vmatpush1.msra.mxu0 %v2368
  %2370 = vmatprep.subr.mxu0 0.0
  %v2371 = vand.u32 %v16, 4294901760
  %2372 = vmatpush1.msra.mxu0 %v2371
  %2373 = vmatprep.subr.mxu0 0.0
  %v2374 = vand.u32 %v15, 4294901760
  %2375 = vmatpush1.msra.mxu0 %v2374
  %2376 = vmatprep.subr.mxu0 0.0
  %v2377 = vand.u32 %v14, 4294901760
  %2378 = vmatpush1.msra.mxu0 %v2377
  %2379 = vmatprep.subr.mxu0 0.0
  %v2380 = vand.u32 %v13, 4294901760
  %2381 = vmatpush1.msra.mxu0 %v2380
  %2382 = vmatprep.subr.mxu0 0.0
  %v2383 = vand.u32 %v12, 4294901760
  %2384 = vmatpush1.msra.mxu0 %v2383
  %2385 = vmatprep.subr.mxu0 0.0
  %2386 = vmatpush2.msra.mxu0 0.0
  %2387 = vmatprep.subr.mxu0 0.0
  %2388 = vmatpush2.msra.mxu0 0.0
  %2389 = vmatprep.subr.mxu0 0.0
  %2390 = vmatpush2.msra.mxu0 0.0
  %2391 = vmatprep.subr.mxu0 0.0
  %2392 = vmatpush2.msra.mxu0 0.0
  %2393 = vmatprep.subr.mxu0 0.0
  %2394 = vmatpush2.msra.mxu0 0.0
  %2395 = vmatprep.subr.mxu0 0.0
  %2396 = vmatpush2.msra.mxu0 0.0
  %2397 = vmatprep.subr.mxu0 0.0
  %2398 = vmatpush2.msra.mxu0 0.0
  %2399 = vmatprep.subr.mxu0 0.0
  %2400 = vmatpush2.msra.mxu0 0.0
  %2401 = vmatprep.subr.mxu0 0.0
  %2402 = vmatpush2.msra.mxu0 0.0
  %2403 = vmatprep.subr.mxu0 0.0
  %2404 = vmatpush2.msra.mxu0 0.0
  %2405 = vmatprep.subr.mxu0 0.0
  %2406 = vmatpush2.msra.mxu0 0.0
  %2407 = vmatprep.subr.mxu0 0.0
  %2408 = vmatpush2.msra.mxu0 0.0
  %2409 = vmatprep.subr.mxu0 0.0
  %2410 = vmatpush2.msra.mxu0 0.0
  %2411 = vmatprep.subr.mxu0 0.0
  %2412 = vmatpush2.msra.mxu0 0.0
  %2413 = vmatprep.subr.mxu0 0.0
  %2414 = vmatpush2.msra.mxu0 0.0
  %2415 = vmatprep.subr.mxu0 0.0
  %2416 = vmatpush2.msra.mxu0 0.0
  %2417 = vmatprep.mubr.f32.mxu0 0.0
  %v2418 = vand.u32 %v1990, 4294901760
  %v2419 = vsub.f32 %v1990, %v2418
  %v2420 = vand.u32 %v2419, 4294901760
  %2421 = vmatmul.mubr.f32.gmra.mxu0 %v2420
  %v2422 = vpop.f32.mrf.mxu0
  %v2423 = vadd.f32 %v2334, %v2422
  %v2424 = vpop.f32.mrf.mxu0
  %2425 = vdwg.mxu0
  %2426 = vmatprep.subr.mxu0 0.0
  %v2427 = vand.u32 %v27, 4294901760
  %v2428 = vsub.f32 %v27, %v2427
  %v2429 = vand.u32 %v2428, 4294901760
  %2430 = vmatpush1.msra.mxu0 %v2429
  %2431 = vmatprep.subr.mxu0 0.0
  %v2432 = vand.u32 %v26, 4294901760
  %v2433 = vsub.f32 %v26, %v2432
  %v2434 = vand.u32 %v2433, 4294901760
  %2435 = vmatpush1.msra.mxu0 %v2434
  %2436 = vmatprep.subr.mxu0 0.0
  %v2437 = vand.u32 %v25, 4294901760
  %v2438 = vsub.f32 %v25, %v2437
  %v2439 = vand.u32 %v2438, 4294901760
  %2440 = vmatpush1.msra.mxu0 %v2439
  %2441 = vmatprep.subr.mxu0 0.0
  %v2442 = vand.u32 %v24, 4294901760
  %v2443 = vsub.f32 %v24, %v2442
  %v2444 = vand.u32 %v2443, 4294901760
  %2445 = vmatpush1.msra.mxu0 %v2444
  %2446 = vmatprep.subr.mxu0 0.0
  %v2447 = vand.u32 %v23, 4294901760
  %v2448 = vsub.f32 %v23, %v2447
  %v2449 = vand.u32 %v2448, 4294901760
  %2450 = vmatpush1.msra.mxu0 %v2449
  %2451 = vmatprep.subr.mxu0 0.0
  %v2452 = vand.u32 %v22, 4294901760
  %v2453 = vsub.f32 %v22, %v2452
  %v2454 = vand.u32 %v2453, 4294901760
  %2455 = vmatpush1.msra.mxu0 %v2454
  %2456 = vmatprep.subr.mxu0 0.0
  %v2457 = vand.u32 %v21, 4294901760
  %v2458 = vsub.f32 %v21, %v2457
  %v2459 = vand.u32 %v2458, 4294901760
  %2460 = vmatpush1.msra.mxu0 %v2459
  %2461 = vmatprep.subr.mxu0 0.0
  %v2462 = vand.u32 %v20, 4294901760
  %v2463 = vsub.f32 %v20, %v2462
  %v2464 = vand.u32 %v2463, 4294901760
  %2465 = vmatpush1.msra.mxu0 %v2464
  %2466 = vmatprep.subr.mxu0 0.0
  %v2467 = vand.u32 %v19, 4294901760
  %v2468 = vsub.f32 %v19, %v2467
  %v2469 = vand.u32 %v2468, 4294901760
  %2470 = vmatpush1.msra.mxu0 %v2469
  %2471 = vmatprep.subr.mxu0 0.0
  %v2472 = vand.u32 %v18, 4294901760
  %v2473 = vsub.f32 %v18, %v2472
  %v2474 = vand.u32 %v2473, 4294901760
  %2475 = vmatpush1.msra.mxu0 %v2474
  %2476 = vmatprep.subr.mxu0 0.0
  %v2477 = vand.u32 %v17, 4294901760
  %v2478 = vsub.f32 %v17, %v2477
  %v2479 = vand.u32 %v2478, 4294901760
  %2480 = vmatpush1.msra.mxu0 %v2479
  %2481 = vmatprep.subr.mxu0 0.0
  %v2482 = vand.u32 %v16, 4294901760
  %v2483 = vsub.f32 %v16, %v2482
  %v2484 = vand.u32 %v2483, 4294901760
  %2485 = vmatpush1.msra.mxu0 %v2484
  %2486 = vmatprep.subr.mxu0 0.0
  %v2487 = vand.u32 %v15, 4294901760
  %v2488 = vsub.f32 %v15, %v2487
  %v2489 = vand.u32 %v2488, 4294901760
  %2490 = vmatpush1.msra.mxu0 %v2489
  %2491 = vmatprep.subr.mxu0 0.0
  %v2492 = vand.u32 %v14, 4294901760
  %v2493 = vsub.f32 %v14, %v2492
  %v2494 = vand.u32 %v2493, 4294901760
  %2495 = vmatpush1.msra.mxu0 %v2494
  %2496 = vmatprep.subr.mxu0 0.0
  %v2497 = vand.u32 %v13, 4294901760
  %v2498 = vsub.f32 %v13, %v2497
  %v2499 = vand.u32 %v2498, 4294901760
  %2500 = vmatpush1.msra.mxu0 %v2499
  %2501 = vmatprep.subr.mxu0 0.0
  %v2502 = vand.u32 %v12, 4294901760
  %v2503 = vsub.f32 %v12, %v2502
  %v2504 = vand.u32 %v2503, 4294901760
  %2505 = vmatpush1.msra.mxu0 %v2504
  %2506 = vmatprep.subr.mxu0 0.0
  %2507 = vmatpush2.msra.mxu0 0.0
  %2508 = vmatprep.subr.mxu0 0.0
  %2509 = vmatpush2.msra.mxu0 0.0
  %2510 = vmatprep.subr.mxu0 0.0
  %2511 = vmatpush2.msra.mxu0 0.0
  %2512 = vmatprep.subr.mxu0 0.0
  %2513 = vmatpush2.msra.mxu0 0.0
  %2514 = vmatprep.subr.mxu0 0.0
  %2515 = vmatpush2.msra.mxu0 0.0
  %2516 = vmatprep.subr.mxu0 0.0
  %2517 = vmatpush2.msra.mxu0 0.0
  %2518 = vmatprep.subr.mxu0 0.0
  %2519 = vmatpush2.msra.mxu0 0.0
  %2520 = vmatprep.subr.mxu0 0.0
  %2521 = vmatpush2.msra.mxu0 0.0
  %2522 = vmatprep.subr.mxu0 0.0
  %2523 = vmatpush2.msra.mxu0 0.0
  %2524 = vmatprep.subr.mxu0 0.0
  %2525 = vmatpush2.msra.mxu0 0.0
  %2526 = vmatprep.subr.mxu0 0.0
  %2527 = vmatpush2.msra.mxu0 0.0
  %2528 = vmatprep.subr.mxu0 0.0
  %2529 = vmatpush2.msra.mxu0 0.0
  %2530 = vmatprep.subr.mxu0 0.0
  %2531 = vmatpush2.msra.mxu0 0.0
  %2532 = vmatprep.subr.mxu0 0.0
  %2533 = vmatpush2.msra.mxu0 0.0
  %2534 = vmatprep.subr.mxu0 0.0
  %2535 = vmatpush2.msra.mxu0 0.0
  %2536 = vmatprep.subr.mxu0 0.0
  %2537 = vmatpush2.msra.mxu0 0.0
  %2538 = vmatprep.mubr.f32.mxu0 0.0
  %v2539 = vand.u32 %v1990, 4294901760
  %2540 = vmatmul.mubr.f32.gmra.mxu0 %v2539
  %v2541 = vpop.f32.mrf.mxu0
  %v2542 = vadd.f32 %v2423, %v2541
  %v2543 = vpop.f32.mrf.mxu0
  %2544 = vdwg.mxu0
  %2545 = vmatprep.subr.mxu0 0.0
  %v2546 = vand.u32 %v27, 4294901760
  %2547 = vmatpush1.msra.mxu0 %v2546
  %2548 = vmatprep.subr.mxu0 0.0
  %v2549 = vand.u32 %v26, 4294901760
  %2550 = vmatpush1.msra.mxu0 %v2549
  %2551 = vmatprep.subr.mxu0 0.0
  %v2552 = vand.u32 %v25, 4294901760
  %2553 = vmatpush1.msra.mxu0 %v2552
  %2554 = vmatprep.subr.mxu0 0.0
  %v2555 = vand.u32 %v24, 4294901760
  %2556 = vmatpush1.msra.mxu0 %v2555
  %2557 = vmatprep.subr.mxu0 0.0
  %v2558 = vand.u32 %v23, 4294901760
  %2559 = vmatpush1.msra.mxu0 %v2558
  %2560 = vmatprep.subr.mxu0 0.0
  %v2561 = vand.u32 %v22, 4294901760
  %2562 = vmatpush1.msra.mxu0 %v2561
  %2563 = vmatprep.subr.mxu0 0.0
  %v2564 = vand.u32 %v21, 4294901760
  %2565 = vmatpush1.msra.mxu0 %v2564
  %2566 = vmatprep.subr.mxu0 0.0
  %v2567 = vand.u32 %v20, 4294901760
  %2568 = vmatpush1.msra.mxu0 %v2567
  %2569 = vmatprep.subr.mxu0 0.0
  %v2570 = vand.u32 %v19, 4294901760
  %2571 = vmatpush1.msra.mxu0 %v2570
  %2572 = vmatprep.subr.mxu0 0.0
  %v2573 = vand.u32 %v18, 4294901760
  %2574 = vmatpush1.msra.mxu0 %v2573
  %2575 = vmatprep.subr.mxu0 0.0
  %v2576 = vand.u32 %v17, 4294901760
  %2577 = vmatpush1.msra.mxu0 %v2576
  %2578 = vmatprep.subr.mxu0 0.0
  %v2579 = vand.u32 %v16, 4294901760
  %2580 = vmatpush1.msra.mxu0 %v2579
  %2581 = vmatprep.subr.mxu0 0.0
  %v2582 = vand.u32 %v15, 4294901760
  %2583 = vmatpush1.msra.mxu0 %v2582
  %2584 = vmatprep.subr.mxu0 0.0
  %v2585 = vand.u32 %v14, 4294901760
  %2586 = vmatpush1.msra.mxu0 %v2585
  %2587 = vmatprep.subr.mxu0 0.0
  %v2588 = vand.u32 %v13, 4294901760
  %2589 = vmatpush1.msra.mxu0 %v2588
  %2590 = vmatprep.subr.mxu0 0.0
  %v2591 = vand.u32 %v12, 4294901760
  %2592 = vmatpush1.msra.mxu0 %v2591
  %2593 = vmatprep.subr.mxu0 0.0
  %2594 = vmatpush2.msra.mxu0 0.0
  %2595 = vmatprep.subr.mxu0 0.0
  %2596 = vmatpush2.msra.mxu0 0.0
  %2597 = vmatprep.subr.mxu0 0.0
  %2598 = vmatpush2.msra.mxu0 0.0
  %2599 = vmatprep.subr.mxu0 0.0
  %2600 = vmatpush2.msra.mxu0 0.0
  %2601 = vmatprep.subr.mxu0 0.0
  %2602 = vmatpush2.msra.mxu0 0.0
  %2603 = vmatprep.subr.mxu0 0.0
  %2604 = vmatpush2.msra.mxu0 0.0
  %2605 = vmatprep.subr.mxu0 0.0
  %2606 = vmatpush2.msra.mxu0 0.0
  %2607 = vmatprep.subr.mxu0 0.0
  %2608 = vmatpush2.msra.mxu0 0.0
  %2609 = vmatprep.subr.mxu0 0.0
  %2610 = vmatpush2.msra.mxu0 0.0
  %2611 = vmatprep.subr.mxu0 0.0
  %2612 = vmatpush2.msra.mxu0 0.0
  %2613 = vmatprep.subr.mxu0 0.0
  %2614 = vmatpush2.msra.mxu0 0.0
  %2615 = vmatprep.subr.mxu0 0.0
  %2616 = vmatpush2.msra.mxu0 0.0
  %2617 = vmatprep.subr.mxu0 0.0
  %2618 = vmatpush2.msra.mxu0 0.0
  %2619 = vmatprep.subr.mxu0 0.0
  %2620 = vmatpush2.msra.mxu0 0.0
  %2621 = vmatprep.subr.mxu0 0.0
  %2622 = vmatpush2.msra.mxu0 0.0
  %2623 = vmatprep.subr.mxu0 0.0
  %2624 = vmatpush2.msra.mxu0 0.0
  %2625 = vmatprep.mubr.f32.mxu0 0.0
  %v2626 = vand.u32 %v1990, 4294901760
  %2627 = vmatmul.mubr.f32.gmra.mxu0 %v2626
  %v2628 = vpop.f32.mrf.mxu0
  %v2629 = vadd.f32 %v2542, %v2628
  %v2630 = vpop.f32.mrf.mxu0
  %2631 = vdwg.mxu0
  %2633 = vrot.lane.b32.xlu0 %v2629, 96
  %v2634 = vpop.permute.xlu0 %2633
  %vm2636 = vcmask 1048320
  %2637 = vst.msk [vmem:[%s2] sm:$0xff] %vm2636, %v2634
  // Predicated region
  $region10: #{_group_lookup.1} parent=0 // pred_check
    _
  $region11: #{_group_lookup.1} parent=0 // pred_check_branch
    %2639 = sbr.rel (0) target = $region13
  $region12: #{_group_lookup.1} parent=0 // pred_region
    _
  $region13: #{_group_lookup.1} parent=0 // pred_fallthru
    _
  // Predicated region
  $region14: #{_group_lookup.1} parent=0 // pred_check
    _
  $region15: #{_group_lookup.1} parent=0 // pred_check_branch
    %2641 = sbr.rel (0) target = $region17
  $region16: #{_group_lookup.1} parent=0 // pred_region
    _
  $region17: #{_group_lookup.1} parent=0 // pred_fallthru
    _

</llo_original>
